<compile_context>
chip_gen: v6e
topology: v6e:2x2x1
jax: 0.10.0
libtpu: 0.0.40
codegen_flags: <defaults>
</compile_context>

<pallas_src>
import functools
import math

import jax
import jax.numpy as jnp
from jax.experimental import pallas as pl
from jax.experimental.pallas import tpu as pltpu


def _layer_norm(z, gamma, beta, eps=1e-5):
    # PyTorch nn.LayerNorm semantics: biased variance over the last dim, eps inside rsqrt.
    mean = jnp.mean(z, axis=-1, keepdims=True)
    var = jnp.mean((z - mean) ** 2, axis=-1, keepdims=True)
    return (z - mean) * jax.lax.rsqrt(var + eps) * gamma + beta


def _encoder_block_kernel(num_heads,
                          valid_lens_ref,                       # scalar prefetch (SMEM), (B,)
                          xq_ref, xkv_ref,                      # (tq, H), (tk, H) activation tiles
                          wq_ref, wk_ref, wv_ref, wo_ref,       # (H, H) bf16
                          g1_ref, be1_ref,                      # (1, H) f32
                          w1_ref, b1_ref, w2_ref, b2_ref,       # (H,F) bf16, (1,F) f32, (F,H) bf16, (1,H) f32
                          g2_ref, be2_ref,                      # (1, H) f32
                          o_ref,                                # (tq, H)
                          q_sc, m_sc, l_sc, acc_sc):            # scratch
    b = pl.program_id(0)
    ki = pl.program_id(2)
    nkt = pl.num_programs(2)
    vlen = valid_lens_ref[b]

    tq, H = xq_ref.shape
    tk = xkv_ref.shape[0]
    hd = H // num_heads
    scale = 1.0 / math.sqrt(hd)
    bf16 = jnp.bfloat16
    f32 = jnp.float32

    # ---- first K/V tile for this (batch, q-tile): project Q once, reset online-softmax state.
    @pl.when(ki == 0)
    def _():
        xq_bf = xq_ref[...].astype(bf16)
        q_sc[...] = jnp.dot(xq_bf, wq_ref[...], preferred_element_type=f32).astype(bf16)
        m_sc[...] = jnp.full_like(m_sc, -jnp.inf)
        l_sc[...] = jnp.zeros_like(l_sc)
        acc_sc[...] = jnp.zeros_like(acc_sc)

    # ---- project this K/V tile (bf16 MXU inputs, f32 accumulation).
    xkv_bf = xkv_ref[...].astype(bf16)
    k = jnp.dot(xkv_bf, wk_ref[...], preferred_element_type=f32).astype(bf16)
    v = jnp.dot(xkv_bf, wv_ref[...], preferred_element_type=f32).astype(bf16)

    # d2l masked_softmax: key positions >= valid_len get a -1e6 fill (global column index).
    col = ki * tk + jax.lax.broadcasted_iota(jnp.int32, (tq, tk), 1)
    keep = col < vlen

    q_all = q_sc[...]                                  # (tq, H) bf16
    dn = (((1,), (1,)), ((), ()))                      # contract last dims: (tq,hd)x(tk,hd)->(tq,tk)

    # Static head loop (num_heads is small); per-head state lives in VMEM scratch so unrolled
    # temporaries stay short-lived.  For very large num_heads switch to lax.fori_loop.
    for h in range(num_heads):
        sl = slice(h * hd, (h + 1) * hd)
        s = jax.lax.dot_general(q_all[:, sl], k[:, sl], dn,
                                preferred_element_type=f32) * scale   # (tq, tk) f32
        s = jnp.where(keep, s, -1e6)

        m_prev = m_sc[h]                               # (tq, 1)
        m_new = jnp.maximum(m_prev, jnp.max(s, axis=-1, keepdims=True))
        alpha = jnp.exp(m_prev - m_new)
        p = jnp.exp(s - m_new)
        l_sc[h] = alpha * l_sc[h] + jnp.sum(p, axis=-1, keepdims=True)
        pv = jnp.dot(p.astype(bf16), v[:, sl], preferred_element_type=f32)   # (tq, hd)
        acc_sc[:, sl] = alpha * acc_sc[:, sl] + pv
        m_sc[h] = m_new

    # ---- last K/V tile: finalize softmax, W_o projection, AddLNorm, FFN, AddLNorm.
    @pl.when(ki == nkt - 1)
    def _():
        for h in range(num_heads):
            sl = slice(h * hd, (h + 1) * hd)
            acc_sc[:, sl] = acc_sc[:, sl] * pl.reciprocal(l_sc[h], approx=True)

        x = xq_ref[...].astype(f32)
        # Heads are already concatenated in acc_sc -> one full-width (tq,H)@(H,H) W_o matmul.
        attn = jnp.dot(acc_sc[...].astype(bf16), wo_ref[...], preferred_element_type=f32)

        y = _layer_norm(x + attn, g1_ref[...], be1_ref[...])

        # PositionWiseFFN: dense2(relu(dense1(y))).  (ffn hidden dim kept resident here;
        # add another grid axis / weight chunking for very large ffn dims.)
        h1 = jnp.dot(y.astype(bf16), w1_ref[...], preferred_element_type=f32) + b1_ref[...]
        h1 = jnp.maximum(h1, 0.0)
        ffn = jnp.dot(h1.astype(bf16), w2_ref[...], preferred_element_type=f32) + b2_ref[...]

        o_ref[...] = _layer_norm(y + ffn, g2_ref[...], be2_ref[...]).astype(o_ref.dtype)


def transformer_encoder_block(x, valid_lens, params, num_heads, *, tq=None, tk=None):
    """x: (B, S, H); valid_lens: (B,) int32; params: dict of f32 weights."""
    B, S, H = x.shape
    assert H % num_heads == 0

    # Tile sizes: pick the biggest that fits VMEM (amortizes per-step overhead).
    # Defaults target v5e/v6e (128 MiB VMEM); roughly halve for v7x (64 MiB).
    if tq is None:
        tq = S if S <= 256 else 256
    if tk is None:
        tk = S if S <= 512 else 512
    assert S % tq == 0 and S % tk == 0, "sequence length must be divisible by the tile sizes"

    bf16 = jnp.bfloat16
    # Matmul weights become bf16 MXU operands (f32 accumulation in-kernel); LN/bias params stay f32.
    names = ("wq", "wk", "wv", "wo", "g1", "be1", "w1", "b1", "w2", "b2", "g2", "be2")
    cast = {"wq": bf16, "wk": bf16, "wv": bf16, "wo": bf16, "w1": bf16, "w2": bf16}
    param_arrays = [params[n].astype(cast.get(n, jnp.float32)) for n in names]
    # NOTE: weight blocks are constant across the grid; on v7x consider single-buffering them
    # (pipeline_mode=pl.Buffered(1) or a one-time DMA) to free VMEM for bigger activation tiles.
    param_specs = [pl.BlockSpec(p.shape, lambda b, qi, ki, vl: (0, 0)) for p in param_arrays]

    grid_spec = pltpu.PrefetchScalarGridSpec(
        num_scalar_prefetch=1,
        grid=(B, S // tq, S // tk),
        in_specs=[
            pl.BlockSpec((None, tq, H), lambda b, qi, ki, vl: (b, qi, 0)),   # queries / residual
            pl.BlockSpec((None, tk, H), lambda b, qi, ki, vl: (b, ki, 0)),   # keys / values source
        ] + param_specs,
        out_specs=pl.BlockSpec((None, tq, H), lambda b, qi, ki, vl: (b, qi, 0)),
        scratch_shapes=[
            pltpu.VMEM((tq, H), bf16),                       # projected Q tile
            pltpu.VMEM((num_heads, tq, 1), jnp.float32),     # running max (per head)
            pltpu.VMEM((num_heads, tq, 1), jnp.float32),     # running denominator (per head)
            pltpu.VMEM((tq, H), jnp.float32),                # concatenated per-head output accumulator
        ],
    )

    kernel = functools.partial(_encoder_block_kernel, num_heads)
    return pl.pallas_call(
        kernel,
        out_shape=jax.ShapeDtypeStruct((B, S, H), x.dtype),
        grid_spec=grid_spec,
        compiler_params=pltpu.CompilerParams(
            dimension_semantics=("parallel", "parallel", "arbitrary"),
            vmem_limit_bytes=64 * 1024 * 1024,
        ),
    )(valid_lens, x, x, *param_arrays)


def _reference(x, valid_lens, params, num_heads):
    """Pure-JAX f32 reference of the same forward pass (for a sanity check)."""
    B, S, H = x.shape
    hd = H // num_heads
    q = x @ params["wq"]
    k = x @ params["wk"]
    v = x @ params["wv"]

    def split(a):  # (B,S,H) -> (B, nh, S, hd)
        return a.reshape(B, S, num_heads, hd).transpose(0, 2, 1, 3)

    qh, kh, vh = split(q), split(k), split(v)
    s = jnp.einsum("bhqd,bhkd->bhqk", qh, kh) / math.sqrt(hd)
    col = jnp.arange(S)[None, None, None, :]
    keep = col < valid_lens[:, None, None, None]
    s = jnp.where(keep, s, -1e6)
    p = jax.nn.softmax(s, axis=-1)
    oh = jnp.einsum("bhqk,bhkd->bhqd", p, vh)
    attn = oh.transpose(0, 2, 1, 3).reshape(B, S, H) @ params["wo"]

    def ln(z, g, b):
        m = jnp.mean(z, axis=-1, keepdims=True)
        vv = jnp.mean((z - m) ** 2, axis=-1, keepdims=True)
        return (z - m) * jax.lax.rsqrt(vv + 1e-5) * g + b

    y = ln(x + attn, params["g1"], params["be1"])
    ffn = jnp.maximum(y @ params["w1"] + params["b1"], 0.0) @ params["w2"] + params["b2"]
    return ln(y + ffn, params["g2"], params["be2"])


if __name__ == "__main__":
    key = jax.random.PRNGKey(0)
    B, S, H = 2, 16, 32
    num_heads, ffn_hidden = 4, 64

    keys = jax.random.split(key, 10)

    def init(k, shape, scale=0.05):
        return jax.random.normal(k, shape, dtype=jnp.float32) * scale

    params = {
        "wq": init(keys[0], (H, H)),
        "wk": init(keys[1], (H, H)),
        "wv": init(keys[2], (H, H)),
        "wo": init(keys[3], (H, H)),
        "g1": jnp.ones((1, H), jnp.float32),
        "be1": jnp.zeros((1, H), jnp.float32),
        "w1": init(keys[4], (H, ffn_hidden)),
        "b1": init(keys[5], (1, ffn_hidden)),
        "w2": init(keys[6], (ffn_hidden, H)),
        "b2": init(keys[7], (1, H)),
        "g2": jnp.ones((1, H), jnp.float32),
        "be2": jnp.zeros((1, H), jnp.float32),
    }

    x = jax.random.normal(keys[8], (B, S, H), dtype=jnp.float32)
    valid_lens = jnp.array([5, 16], dtype=jnp.int32)

    # tq=tk=8 -> grid (B, 2, 2): exercises q-tiling and the online-softmax K/V streaming
    # (including a fully-masked trailing K/V tile for the first batch element).
    out = transformer_encoder_block(x, valid_lens, params, num_heads, tq=8, tk=8)
    jax.block_until_ready(out)

    ref = _reference(x, valid_lens, params, num_heads)
    assert out.shape == (B, S, H)
    # bf16 MXU operands + approx reciprocal -> compare against the f32 reference at bf16-level tolerance.
    assert jnp.allclose(out, ref, atol=5e-2, rtol=5e-2), float(jnp.max(jnp.abs(out - ref)))

    print("KERNEL_OK")
</pallas_src>

<mosaic_0001>
module attributes {stable_mosaic.version = 11 : i64} {
  func.func @_encoder_block_kernel(%arg0: i32, %arg1: i32, %arg2: i32, %arg3: memref<2xi32, #tpu.memory_space<smem>>, %arg4: memref<1x8x32xf32, #tpu.memory_space<vmem>>, %arg5: memref<1x8x32xf32, #tpu.memory_space<vmem>>, %arg6: memref<32x32xbf16, #tpu.memory_space<vmem>>, %arg7: memref<32x32xbf16, #tpu.memory_space<vmem>>, %arg8: memref<32x32xbf16, #tpu.memory_space<vmem>>, %arg9: memref<32x32xbf16, #tpu.memory_space<vmem>>, %arg10: memref<1x32xf32, #tpu.memory_space<vmem>>, %arg11: memref<1x32xf32, #tpu.memory_space<vmem>>, %arg12: memref<32x64xbf16, #tpu.memory_space<vmem>>, %arg13: memref<1x64xf32, #tpu.memory_space<vmem>>, %arg14: memref<64x32xbf16, #tpu.memory_space<vmem>>, %arg15: memref<1x32xf32, #tpu.memory_space<vmem>>, %arg16: memref<1x32xf32, #tpu.memory_space<vmem>>, %arg17: memref<1x32xf32, #tpu.memory_space<vmem>>, %arg18: memref<1x8x32xf32, #tpu.memory_space<vmem>>, %arg19: memref<8x32xbf16, #tpu.memory_space<vmem>>, %arg20: memref<4x8x1xf32, #tpu.memory_space<vmem>>, %arg21: memref<4x8x1xf32, #tpu.memory_space<vmem>>, %arg22: memref<8x32xf32, #tpu.memory_space<vmem>>) attributes {dimension_semantics = [#tpu.dimension_semantics<parallel>, #tpu.dimension_semantics<parallel>, #tpu.dimension_semantics<arbitrary>], iteration_bounds = array<i64: 2, 2, 2>, scalar_prefetch = 1 : i64, scratch_operands = 4 : i64, tpu.core_type = #tpu.core_type<tc>, window_params = [{transform_indices = @transform_0, window_bounds = array<i64: 1, 8, 32>}, {transform_indices = @transform_1, window_bounds = array<i64: 1, 8, 32>}, {pipeline_mode = #tpu.pipeline_mode<synchronous>, transform_indices = @transform_2, window_bounds = array<i64: 32, 32>}, {pipeline_mode = #tpu.pipeline_mode<synchronous>, transform_indices = @transform_3, window_bounds = array<i64: 32, 32>}, {pipeline_mode = #tpu.pipeline_mode<synchronous>, transform_indices = @transform_4, window_bounds = array<i64: 32, 32>}, {pipeline_mode = #tpu.pipeline_mode<synchronous>, transform_indices = @transform_5, window_bounds = array<i64: 32, 32>}, {pipeline_mode = #tpu.pipeline_mode<synchronous>, transform_indices = @transform_6, window_bounds = array<i64: 1, 32>}, {pipeline_mode = #tpu.pipeline_mode<synchronous>, transform_indices = @transform_7, window_bounds = array<i64: 1, 32>}, {pipeline_mode = #tpu.pipeline_mode<synchronous>, transform_indices = @transform_8, window_bounds = array<i64: 32, 64>}, {pipeline_mode = #tpu.pipeline_mode<synchronous>, transform_indices = @transform_9, window_bounds = array<i64: 1, 64>}, {pipeline_mode = #tpu.pipeline_mode<synchronous>, transform_indices = @transform_10, window_bounds = array<i64: 64, 32>}, {pipeline_mode = #tpu.pipeline_mode<synchronous>, transform_indices = @transform_11, window_bounds = array<i64: 1, 32>}, {pipeline_mode = #tpu.pipeline_mode<synchronous>, transform_indices = @transform_12, window_bounds = array<i64: 1, 32>}, {pipeline_mode = #tpu.pipeline_mode<synchronous>, transform_indices = @transform_13, window_bounds = array<i64: 1, 32>}, {transform_indices = @transform_14, window_bounds = array<i64: 1, 8, 32>}]} {
    %0 = arith.index_cast %arg0 : i32 to index
    %1 = memref.load %arg3[%0] : memref<2xi32, #tpu.memory_space<smem>>
    %c0_i32 = arith.constant 0 : i32
    %2 = arith.cmpi eq, %arg2, %c0_i32 : i32
    %3 = arith.extui %2 : i1 to i32
    %c0_i32_0 = arith.constant 0 : i32
    %4 = arith.cmpi ne, %3, %c0_i32_0 : i32
    scf.if %4 {
      %c0_93 = arith.constant 0 : index
      %c0_94 = arith.constant 0 : index
      %c0_95 = arith.constant 0 : index
      %172 = vector.load %arg4[%c0_93, %c0_94, %c0_95] : memref<1x8x32xf32, #tpu.memory_space<vmem>>, vector<1x8x32xf32>
      %173 = vector.shape_cast %172 : vector<1x8x32xf32> to vector<8x32xf32>
      %174 = arith.truncf %173 : vector<8x32xf32> to vector<8x32xbf16>
      %c0_96 = arith.constant 0 : index
      %c0_97 = arith.constant 0 : index
      %175 = vector.load %arg6[%c0_96, %c0_97] : memref<32x32xbf16, #tpu.memory_space<vmem>>, vector<32x32xbf16>
      %cst_98 = arith.constant dense<0.000000e+00> : vector<8x32xf32>
      %176 = tpu.matmul %174, %175, %cst_98 {dimension_numbers = #tpu.dot_dimension_numbers<[1], [0], [0], [1], [0, 0, 1, 1], [], []>} : vector<8x32xbf16>, vector<32x32xbf16>, vector<8x32xf32> -> vector<8x32xf32>
      %177 = arith.truncf %176 : vector<8x32xf32> to vector<8x32xbf16>
      %c0_99 = arith.constant 0 : index
      %c0_100 = arith.constant 0 : index
      %178 = vector.load %arg19[%c0_99, %c0_100] : memref<8x32xbf16, #tpu.memory_space<vmem>>, vector<8x32xbf16>
      tpu.vector_store %arg19[%c0_99, %c0_100], %177 {strides = array<i32>} : memref<8x32xbf16, #tpu.memory_space<vmem>>, vector<8x32xbf16>,
      %cst_101 = arith.constant 0xFF800000 : f32
      %179 = vector.broadcast %cst_101 : f32 to vector<4x8x1xf32>
      %c0_102 = arith.constant 0 : index
      %c0_103 = arith.constant 0 : index
      %c0_104 = arith.constant 0 : index
      %180 = vector.load %arg20[%c0_102, %c0_103, %c0_104] : memref<4x8x1xf32, #tpu.memory_space<vmem>>, vector<4x8x1xf32>
      tpu.vector_store %arg20[%c0_102, %c0_103, %c0_104], %179 {strides = array<i32>} : memref<4x8x1xf32, #tpu.memory_space<vmem>>, vector<4x8x1xf32>,
      %cst_105 = arith.constant 0.000000e+00 : f32
      %181 = vector.broadcast %cst_105 : f32 to vector<4x8x1xf32>
      %c0_106 = arith.constant 0 : index
      %c0_107 = arith.constant 0 : index
      %c0_108 = arith.constant 0 : index
      %182 = vector.load %arg21[%c0_106, %c0_107, %c0_108] : memref<4x8x1xf32, #tpu.memory_space<vmem>>, vector<4x8x1xf32>
      tpu.vector_store %arg21[%c0_106, %c0_107, %c0_108], %181 {strides = array<i32>} : memref<4x8x1xf32, #tpu.memory_space<vmem>>, vector<4x8x1xf32>,
      %cst_109 = arith.constant 0.000000e+00 : f32
      %183 = vector.broadcast %cst_109 : f32 to vector<8x32xf32>
      %c0_110 = arith.constant 0 : index
      %c0_111 = arith.constant 0 : index
      %184 = vector.load %arg22[%c0_110, %c0_111] : memref<8x32xf32, #tpu.memory_space<vmem>>, vector<8x32xf32>
      tpu.vector_store %arg22[%c0_110, %c0_111], %183 {strides = array<i32>} : memref<8x32xf32, #tpu.memory_space<vmem>>, vector<8x32xf32>,
    } else {
    }
    %c0 = arith.constant 0 : index
    %c0_1 = arith.constant 0 : index
    %c0_2 = arith.constant 0 : index
    %5 = vector.load %arg5[%c0, %c0_1, %c0_2] : memref<1x8x32xf32, #tpu.memory_space<vmem>>, vector<1x8x32xf32>
    %6 = vector.shape_cast %5 : vector<1x8x32xf32> to vector<8x32xf32>
    %7 = arith.truncf %6 : vector<8x32xf32> to vector<8x32xbf16>
    %c0_3 = arith.constant 0 : index
    %c0_4 = arith.constant 0 : index
    %8 = vector.load %arg7[%c0_3, %c0_4] : memref<32x32xbf16, #tpu.memory_space<vmem>>, vector<32x32xbf16>
    %cst = arith.constant dense<0.000000e+00> : vector<8x32xf32>
    %9 = tpu.matmul %7, %8, %cst {dimension_numbers = #tpu.dot_dimension_numbers<[1], [0], [0], [1], [0, 0, 1, 1], [], []>} : vector<8x32xbf16>, vector<32x32xbf16>, vector<8x32xf32> -> vector<8x32xf32>
    %10 = arith.truncf %9 : vector<8x32xf32> to vector<8x32xbf16>
    %c0_5 = arith.constant 0 : index
    %c0_6 = arith.constant 0 : index
    %11 = vector.load %arg8[%c0_5, %c0_6] : memref<32x32xbf16, #tpu.memory_space<vmem>>, vector<32x32xbf16>
    %cst_7 = arith.constant dense<0.000000e+00> : vector<8x32xf32>
    %12 = tpu.matmul %7, %11, %cst_7 {dimension_numbers = #tpu.dot_dimension_numbers<[1], [0], [0], [1], [0, 0, 1, 1], [], []>} : vector<8x32xbf16>, vector<32x32xbf16>, vector<8x32xf32> -> vector<8x32xf32>
    %13 = arith.truncf %12 : vector<8x32xf32> to vector<8x32xbf16>
    %c8_i32 = arith.constant 8 : i32
    %14 = arith.muli %arg2, %c8_i32 : i32
    %15 = tpu.iota {dimensions = array<i32: 1>} : vector<8x8xi32>
    %16 = vector.broadcast %14 : i32 to vector<8x8xi32>
    %17 = arith.addi %16, %15 : vector<8x8xi32>
    %18 = vector.broadcast %1 : i32 to vector<8x8xi32>
    %19 = arith.cmpi slt, %17, %18 : vector<8x8xi32>
    %c0_8 = arith.constant 0 : index
    %c0_9 = arith.constant 0 : index
    %20 = vector.load %arg19[%c0_8, %c0_9] : memref<8x32xbf16, #tpu.memory_space<vmem>>, vector<8x32xbf16>
    %21 = vector.extract_strided_slice %20 {offsets = [0, 0], sizes = [8, 8], strides = [1, 1]} : vector<8x32xbf16> to vector<8x8xbf16>
    %22 = vector.extract_strided_slice %10 {offsets = [0, 0], sizes = [8, 8], strides = [1, 1]} : vector<8x32xbf16> to vector<8x8xbf16>
    %cst_10 = arith.constant dense<0.000000e+00> : vector<8x8xf32>
    %23 = tpu.matmul %21, %22, %cst_10 {dimension_numbers = #tpu.dot_dimension_numbers<[1], [1], [0], [0], [0, 0, 1, 0], [], []>} : vector<8x8xbf16>, vector<8x8xbf16>, vector<8x8xf32> -> vector<8x8xf32>
    %cst_11 = arith.constant 0.353553385 : f32
    %24 = vector.broadcast %cst_11 : f32 to vector<8x8xf32>
    %25 = arith.mulf %23, %24 : vector<8x8xf32>
    %cst_12 = arith.constant -1.000000e+06 : f32
    %26 = vector.broadcast %cst_12 : f32 to vector<8x8xf32>
    %27 = arith.select %19, %25, %26 : vector<8x8xi1>, vector<8x8xf32>
    %c0_13 = arith.constant 0 : index
    %c0_14 = arith.constant 0 : index
    %c0_15 = arith.constant 0 : index
    %28 = vector.load %arg20[%c0_13, %c0_14, %c0_15] : memref<4x8x1xf32, #tpu.memory_space<vmem>>, vector<1x8x1xf32>
    %29 = vector.shape_cast %28 : vector<1x8x1xf32> to vector<8x1xf32>
    %cst_16 = arith.constant dense<0xFF800000> : vector<8xf32>
    %30 = vector.multi_reduction <maximumf>, %27, %cst_16 [1] : vector<8x8xf32> to vector<8xf32>
    %31 = vector.shape_cast %30 : vector<8xf32> to vector<8x1xf32>
    %32 = arith.maximumf %29, %31 : vector<8x1xf32>
    %33 = arith.subf %29, %32 : vector<8x1xf32>
    %34 = math.exp %33 : vector<8x1xf32>
    %35 = vector.broadcast %32 : vector<8x1xf32> to vector<8x8xf32>
    %36 = arith.subf %27, %35 : vector<8x8xf32>
    %37 = math.exp %36 : vector<8x8xf32>
    %c0_17 = arith.constant 0 : index
    %c0_18 = arith.constant 0 : index
    %c0_19 = arith.constant 0 : index
    %38 = vector.load %arg21[%c0_17, %c0_18, %c0_19] : memref<4x8x1xf32, #tpu.memory_space<vmem>>, vector<1x8x1xf32>
    %39 = vector.shape_cast %38 : vector<1x8x1xf32> to vector<8x1xf32>
    %40 = arith.mulf %34, %39 : vector<8x1xf32>
    %cst_20 = arith.constant dense<0.000000e+00> : vector<8xf32>
    %41 = vector.multi_reduction <add>, %37, %cst_20 [1] : vector<8x8xf32> to vector<8xf32>
    %42 = vector.shape_cast %41 : vector<8xf32> to vector<8x1xf32>
    %43 = arith.addf %40, %42 : vector<8x1xf32>
    %c0_21 = arith.constant 0 : index
    %c0_22 = arith.constant 0 : index
    %c0_23 = arith.constant 0 : index
    %44 = vector.load %arg21[%c0_21, %c0_22, %c0_23] : memref<4x8x1xf32, #tpu.memory_space<vmem>>, vector<1x8x1xf32>
    %45 = vector.shape_cast %44 : vector<1x8x1xf32> to vector<8x1xf32>
    %46 = vector.shape_cast %43 : vector<8x1xf32> to vector<1x8x1xf32>
    tpu.vector_store %arg21[%c0_21, %c0_22, %c0_23], %46 {strides = array<i32>} : memref<4x8x1xf32, #tpu.memory_space<vmem>>, vector<1x8x1xf32>,
    %47 = arith.truncf %37 : vector<8x8xf32> to vector<8x8xbf16>
    %48 = vector.extract_strided_slice %13 {offsets = [0, 0], sizes = [8, 8], strides = [1, 1]} : vector<8x32xbf16> to vector<8x8xbf16>
    %cst_24 = arith.constant dense<0.000000e+00> : vector<8x8xf32>
    %49 = tpu.matmul %47, %48, %cst_24 {dimension_numbers = #tpu.dot_dimension_numbers<[1], [0], [0], [1], [0, 0, 1, 1], [], []>} : vector<8x8xbf16>, vector<8x8xbf16>, vector<8x8xf32> -> vector<8x8xf32>
    %c0_25 = arith.constant 0 : index
    %c0_26 = arith.constant 0 : index
    %50 = vector.load %arg22[%c0_25, %c0_26] : memref<8x32xf32, #tpu.memory_space<vmem>>, vector<8x8xf32>
    %51 = vector.broadcast %34 : vector<8x1xf32> to vector<8x8xf32>
    %52 = arith.mulf %51, %50 : vector<8x8xf32>
    %53 = arith.addf %52, %49 : vector<8x8xf32>
    %c0_27 = arith.constant 0 : index
    %c0_28 = arith.constant 0 : index
    %54 = vector.load %arg22[%c0_27, %c0_28] : memref<8x32xf32, #tpu.memory_space<vmem>>, vector<8x8xf32>
    tpu.vector_store %arg22[%c0_27, %c0_28], %53 {strides = array<i32>} : memref<8x32xf32, #tpu.memory_space<vmem>>, vector<8x8xf32>,
    %c0_29 = arith.constant 0 : index
    %c0_30 = arith.constant 0 : index
    %c0_31 = arith.constant 0 : index
    %55 = vector.load %arg20[%c0_29, %c0_30, %c0_31] : memref<4x8x1xf32, #tpu.memory_space<vmem>>, vector<1x8x1xf32>
    %56 = vector.shape_cast %55 : vector<1x8x1xf32> to vector<8x1xf32>
    %57 = vector.shape_cast %32 : vector<8x1xf32> to vector<1x8x1xf32>
    tpu.vector_store %arg20[%c0_29, %c0_30, %c0_31], %57 {strides = array<i32>} : memref<4x8x1xf32, #tpu.memory_space<vmem>>, vector<1x8x1xf32>,
    %58 = vector.extract_strided_slice %20 {offsets = [0, 8], sizes = [8, 8], strides = [1, 1]} : vector<8x32xbf16> to vector<8x8xbf16>
    %59 = vector.extract_strided_slice %10 {offsets = [0, 8], sizes = [8, 8], strides = [1, 1]} : vector<8x32xbf16> to vector<8x8xbf16>
    %cst_32 = arith.constant dense<0.000000e+00> : vector<8x8xf32>
    %60 = tpu.matmul %58, %59, %cst_32 {dimension_numbers = #tpu.dot_dimension_numbers<[1], [1], [0], [0], [0, 0, 1, 0], [], []>} : vector<8x8xbf16>, vector<8x8xbf16>, vector<8x8xf32> -> vector<8x8xf32>
    %cst_33 = arith.constant 0.353553385 : f32
    %61 = vector.broadcast %cst_33 : f32 to vector<8x8xf32>
    %62 = arith.mulf %60, %61 : vector<8x8xf32>
    %cst_34 = arith.constant -1.000000e+06 : f32
    %63 = vector.broadcast %cst_34 : f32 to vector<8x8xf32>
    %64 = arith.select %19, %62, %63 : vector<8x8xi1>, vector<8x8xf32>
    %c1 = arith.constant 1 : index
    %c0_35 = arith.constant 0 : index
    %c0_36 = arith.constant 0 : index
    %65 = vector.load %arg20[%c1, %c0_35, %c0_36] : memref<4x8x1xf32, #tpu.memory_space<vmem>>, vector<1x8x1xf32>
    %66 = vector.shape_cast %65 : vector<1x8x1xf32> to vector<8x1xf32>
    %cst_37 = arith.constant dense<0xFF800000> : vector<8xf32>
    %67 = vector.multi_reduction <maximumf>, %64, %cst_37 [1] : vector<8x8xf32> to vector<8xf32>
    %68 = vector.shape_cast %67 : vector<8xf32> to vector<8x1xf32>
    %69 = arith.maximumf %66, %68 : vector<8x1xf32>
    %70 = arith.subf %66, %69 : vector<8x1xf32>
    %71 = math.exp %70 : vector<8x1xf32>
    %72 = vector.broadcast %69 : vector<8x1xf32> to vector<8x8xf32>
    %73 = arith.subf %64, %72 : vector<8x8xf32>
    %74 = math.exp %73 : vector<8x8xf32>
    %c1_38 = arith.constant 1 : index
    %c0_39 = arith.constant 0 : index
    %c0_40 = arith.constant 0 : index
    %75 = vector.load %arg21[%c1_38, %c0_39, %c0_40] : memref<4x8x1xf32, #tpu.memory_space<vmem>>, vector<1x8x1xf32>
    %76 = vector.shape_cast %75 : vector<1x8x1xf32> to vector<8x1xf32>
    %77 = arith.mulf %71, %76 : vector<8x1xf32>
    %cst_41 = arith.constant dense<0.000000e+00> : vector<8xf32>
    %78 = vector.multi_reduction <add>, %74, %cst_41 [1] : vector<8x8xf32> to vector<8xf32>
    %79 = vector.shape_cast %78 : vector<8xf32> to vector<8x1xf32>
    %80 = arith.addf %77, %79 : vector<8x1xf32>
    %c1_42 = arith.constant 1 : index
    %c0_43 = arith.constant 0 : index
    %c0_44 = arith.constant 0 : index
    %81 = vector.load %arg21[%c1_42, %c0_43, %c0_44] : memref<4x8x1xf32, #tpu.memory_space<vmem>>, vector<1x8x1xf32>
    %82 = vector.shape_cast %81 : vector<1x8x1xf32> to vector<8x1xf32>
    %83 = vector.shape_cast %80 : vector<8x1xf32> to vector<1x8x1xf32>
    tpu.vector_store %arg21[%c1_42, %c0_43, %c0_44], %83 {strides = array<i32>} : memref<4x8x1xf32, #tpu.memory_space<vmem>>, vector<1x8x1xf32>,
    %84 = arith.truncf %74 : vector<8x8xf32> to vector<8x8xbf16>
    %85 = vector.extract_strided_slice %13 {offsets = [0, 8], sizes = [8, 8], strides = [1, 1]} : vector<8x32xbf16> to vector<8x8xbf16>
    %cst_45 = arith.constant dense<0.000000e+00> : vector<8x8xf32>
    %86 = tpu.matmul %84, %85, %cst_45 {dimension_numbers = #tpu.dot_dimension_numbers<[1], [0], [0], [1], [0, 0, 1, 1], [], []>} : vector<8x8xbf16>, vector<8x8xbf16>, vector<8x8xf32> -> vector<8x8xf32>
    %c0_46 = arith.constant 0 : index
    %c8 = arith.constant 8 : index
    %87 = vector.load %arg22[%c0_46, %c8] : memref<8x32xf32, #tpu.memory_space<vmem>>, vector<8x8xf32>
    %88 = vector.broadcast %71 : vector<8x1xf32> to vector<8x8xf32>
    %89 = arith.mulf %88, %87 : vector<8x8xf32>
    %90 = arith.addf %89, %86 : vector<8x8xf32>
    %c0_47 = arith.constant 0 : index
    %c8_48 = arith.constant 8 : index
    %91 = vector.load %arg22[%c0_47, %c8_48] : memref<8x32xf32, #tpu.memory_space<vmem>>, vector<8x8xf32>
    tpu.vector_store %arg22[%c0_47, %c8_48], %90 {strides = array<i32>} : memref<8x32xf32, #tpu.memory_space<vmem>>, vector<8x8xf32>,
    %c1_49 = arith.constant 1 : index
    %c0_50 = arith.constant 0 : index
    %c0_51 = arith.constant 0 : index
    %92 = vector.load %arg20[%c1_49, %c0_50, %c0_51] : memref<4x8x1xf32, #tpu.memory_space<vmem>>, vector<1x8x1xf32>
    %93 = vector.shape_cast %92 : vector<1x8x1xf32> to vector<8x1xf32>
    %94 = vector.shape_cast %69 : vector<8x1xf32> to vector<1x8x1xf32>
    tpu.vector_store %arg20[%c1_49, %c0_50, %c0_51], %94 {strides = array<i32>} : memref<4x8x1xf32, #tpu.memory_space<vmem>>, vector<1x8x1xf32>,
    %95 = vector.extract_strided_slice %20 {offsets = [0, 16], sizes = [8, 8], strides = [1, 1]} : vector<8x32xbf16> to vector<8x8xbf16>
    %96 = vector.extract_strided_slice %10 {offsets = [0, 16], sizes = [8, 8], strides = [1, 1]} : vector<8x32xbf16> to vector<8x8xbf16>
    %cst_52 = arith.constant dense<0.000000e+00> : vector<8x8xf32>
    %97 = tpu.matmul %95, %96, %cst_52 {dimension_numbers = #tpu.dot_dimension_numbers<[1], [1], [0], [0], [0, 0, 1, 0], [], []>} : vector<8x8xbf16>, vector<8x8xbf16>, vector<8x8xf32> -> vector<8x8xf32>
    %cst_53 = arith.constant 0.353553385 : f32
    %98 = vector.broadcast %cst_53 : f32 to vector<8x8xf32>
    %99 = arith.mulf %97, %98 : vector<8x8xf32>
    %cst_54 = arith.constant -1.000000e+06 : f32
    %100 = vector.broadcast %cst_54 : f32 to vector<8x8xf32>
    %101 = arith.select %19, %99, %100 : vector<8x8xi1>, vector<8x8xf32>
    %c2 = arith.constant 2 : index
    %c0_55 = arith.constant 0 : index
    %c0_56 = arith.constant 0 : index
    %102 = vector.load %arg20[%c2, %c0_55, %c0_56] : memref<4x8x1xf32, #tpu.memory_space<vmem>>, vector<1x8x1xf32>
    %103 = vector.shape_cast %102 : vector<1x8x1xf32> to vector<8x1xf32>
    %cst_57 = arith.constant dense<0xFF800000> : vector<8xf32>
    %104 = vector.multi_reduction <maximumf>, %101, %cst_57 [1] : vector<8x8xf32> to vector<8xf32>
    %105 = vector.shape_cast %104 : vector<8xf32> to vector<8x1xf32>
    %106 = arith.maximumf %103, %105 : vector<8x1xf32>
    %107 = arith.subf %103, %106 : vector<8x1xf32>
    %108 = math.exp %107 : vector<8x1xf32>
    %109 = vector.broadcast %106 : vector<8x1xf32> to vector<8x8xf32>
    %110 = arith.subf %101, %109 : vector<8x8xf32>
    %111 = math.exp %110 : vector<8x8xf32>
    %c2_58 = arith.constant 2 : index
    %c0_59 = arith.constant 0 : index
    %c0_60 = arith.constant 0 : index
    %112 = vector.load %arg21[%c2_58, %c0_59, %c0_60] : memref<4x8x1xf32, #tpu.memory_space<vmem>>, vector<1x8x1xf32>
    %113 = vector.shape_cast %112 : vector<1x8x1xf32> to vector<8x1xf32>
    %114 = arith.mulf %108, %113 : vector<8x1xf32>
    %cst_61 = arith.constant dense<0.000000e+00> : vector<8xf32>
    %115 = vector.multi_reduction <add>, %111, %cst_61 [1] : vector<8x8xf32> to vector<8xf32>
    %116 = vector.shape_cast %115 : vector<8xf32> to vector<8x1xf32>
    %117 = arith.addf %114, %116 : vector<8x1xf32>
    %c2_62 = arith.constant 2 : index
    %c0_63 = arith.constant 0 : index
    %c0_64 = arith.constant 0 : index
    %118 = vector.load %arg21[%c2_62, %c0_63, %c0_64] : memref<4x8x1xf32, #tpu.memory_space<vmem>>, vector<1x8x1xf32>
    %119 = vector.shape_cast %118 : vector<1x8x1xf32> to vector<8x1xf32>
    %120 = vector.shape_cast %117 : vector<8x1xf32> to vector<1x8x1xf32>
    tpu.vector_store %arg21[%c2_62, %c0_63, %c0_64], %120 {strides = array<i32>} : memref<4x8x1xf32, #tpu.memory_space<vmem>>, vector<1x8x1xf32>,
    %121 = arith.truncf %111 : vector<8x8xf32> to vector<8x8xbf16>
    %122 = vector.extract_strided_slice %13 {offsets = [0, 16], sizes = [8, 8], strides = [1, 1]} : vector<8x32xbf16> to vector<8x8xbf16>
    %cst_65 = arith.constant dense<0.000000e+00> : vector<8x8xf32>
    %123 = tpu.matmul %121, %122, %cst_65 {dimension_numbers = #tpu.dot_dimension_numbers<[1], [0], [0], [1], [0, 0, 1, 1], [], []>} : vector<8x8xbf16>, vector<8x8xbf16>, vector<8x8xf32> -> vector<8x8xf32>
    %c0_66 = arith.constant 0 : index
    %c16 = arith.constant 16 : index
    %124 = vector.load %arg22[%c0_66, %c16] : memref<8x32xf32, #tpu.memory_space<vmem>>, vector<8x8xf32>
    %125 = vector.broadcast %108 : vector<8x1xf32> to vector<8x8xf32>
    %126 = arith.mulf %125, %124 : vector<8x8xf32>
    %127 = arith.addf %126, %123 : vector<8x8xf32>
    %c0_67 = arith.constant 0 : index
    %c16_68 = arith.constant 16 : index
    %128 = vector.load %arg22[%c0_67, %c16_68] : memref<8x32xf32, #tpu.memory_space<vmem>>, vector<8x8xf32>
    tpu.vector_store %arg22[%c0_67, %c16_68], %127 {strides = array<i32>} : memref<8x32xf32, #tpu.memory_space<vmem>>, vector<8x8xf32>,
    %c2_69 = arith.constant 2 : index
    %c0_70 = arith.constant 0 : index
    %c0_71 = arith.constant 0 : index
    %129 = vector.load %arg20[%c2_69, %c0_70, %c0_71] : memref<4x8x1xf32, #tpu.memory_space<vmem>>, vector<1x8x1xf32>
    %130 = vector.shape_cast %129 : vector<1x8x1xf32> to vector<8x1xf32>
    %131 = vector.shape_cast %106 : vector<8x1xf32> to vector<1x8x1xf32>
    tpu.vector_store %arg20[%c2_69, %c0_70, %c0_71], %131 {strides = array<i32>} : memref<4x8x1xf32, #tpu.memory_space<vmem>>, vector<1x8x1xf32>,
    %132 = vector.extract_strided_slice %20 {offsets = [0, 24], sizes = [8, 8], strides = [1, 1]} : vector<8x32xbf16> to vector<8x8xbf16>
    %133 = vector.extract_strided_slice %10 {offsets = [0, 24], sizes = [8, 8], strides = [1, 1]} : vector<8x32xbf16> to vector<8x8xbf16>
    %cst_72 = arith.constant dense<0.000000e+00> : vector<8x8xf32>
    %134 = tpu.matmul %132, %133, %cst_72 {dimension_numbers = #tpu.dot_dimension_numbers<[1], [1], [0], [0], [0, 0, 1, 0], [], []>} : vector<8x8xbf16>, vector<8x8xbf16>, vector<8x8xf32> -> vector<8x8xf32>
    %cst_73 = arith.constant 0.353553385 : f32
    %135 = vector.broadcast %cst_73 : f32 to vector<8x8xf32>
    %136 = arith.mulf %134, %135 : vector<8x8xf32>
    %cst_74 = arith.constant -1.000000e+06 : f32
    %137 = vector.broadcast %cst_74 : f32 to vector<8x8xf32>
    %138 = arith.select %19, %136, %137 : vector<8x8xi1>, vector<8x8xf32>
    %c3 = arith.constant 3 : index
    %c0_75 = arith.constant 0 : index
    %c0_76 = arith.constant 0 : index
    %139 = vector.load %arg20[%c3, %c0_75, %c0_76] : memref<4x8x1xf32, #tpu.memory_space<vmem>>, vector<1x8x1xf32>
    %140 = vector.shape_cast %139 : vector<1x8x1xf32> to vector<8x1xf32>
    %cst_77 = arith.constant dense<0xFF800000> : vector<8xf32>
    %141 = vector.multi_reduction <maximumf>, %138, %cst_77 [1] : vector<8x8xf32> to vector<8xf32>
    %142 = vector.shape_cast %141 : vector<8xf32> to vector<8x1xf32>
    %143 = arith.maximumf %140, %142 : vector<8x1xf32>
    %144 = arith.subf %140, %143 : vector<8x1xf32>
    %145 = math.exp %144 : vector<8x1xf32>
    %146 = vector.broadcast %143 : vector<8x1xf32> to vector<8x8xf32>
    %147 = arith.subf %138, %146 : vector<8x8xf32>
    %148 = math.exp %147 : vector<8x8xf32>
    %c3_78 = arith.constant 3 : index
    %c0_79 = arith.constant 0 : index
    %c0_80 = arith.constant 0 : index
    %149 = vector.load %arg21[%c3_78, %c0_79, %c0_80] : memref<4x8x1xf32, #tpu.memory_space<vmem>>, vector<1x8x1xf32>
    %150 = vector.shape_cast %149 : vector<1x8x1xf32> to vector<8x1xf32>
    %151 = arith.mulf %145, %150 : vector<8x1xf32>
    %cst_81 = arith.constant dense<0.000000e+00> : vector<8xf32>
    %152 = vector.multi_reduction <add>, %148, %cst_81 [1] : vector<8x8xf32> to vector<8xf32>
    %153 = vector.shape_cast %152 : vector<8xf32> to vector<8x1xf32>
    %154 = arith.addf %151, %153 : vector<8x1xf32>
    %c3_82 = arith.constant 3 : index
    %c0_83 = arith.constant 0 : index
    %c0_84 = arith.constant 0 : index
    %155 = vector.load %arg21[%c3_82, %c0_83, %c0_84] : memref<4x8x1xf32, #tpu.memory_space<vmem>>, vector<1x8x1xf32>
    %156 = vector.shape_cast %155 : vector<1x8x1xf32> to vector<8x1xf32>
    %157 = vector.shape_cast %154 : vector<8x1xf32> to vector<1x8x1xf32>
    tpu.vector_store %arg21[%c3_82, %c0_83, %c0_84], %157 {strides = array<i32>} : memref<4x8x1xf32, #tpu.memory_space<vmem>>, vector<1x8x1xf32>,
    %158 = arith.truncf %148 : vector<8x8xf32> to vector<8x8xbf16>
    %159 = vector.extract_strided_slice %13 {offsets = [0, 24], sizes = [8, 8], strides = [1, 1]} : vector<8x32xbf16> to vector<8x8xbf16>
    %cst_85 = arith.constant dense<0.000000e+00> : vector<8x8xf32>
    %160 = tpu.matmul %158, %159, %cst_85 {dimension_numbers = #tpu.dot_dimension_numbers<[1], [0], [0], [1], [0, 0, 1, 1], [], []>} : vector<8x8xbf16>, vector<8x8xbf16>, vector<8x8xf32> -> vector<8x8xf32>
    %c0_86 = arith.constant 0 : index
    %c24 = arith.constant 24 : index
    %161 = vector.load %arg22[%c0_86, %c24] : memref<8x32xf32, #tpu.memory_space<vmem>>, vector<8x8xf32>
    %162 = vector.broadcast %145 : vector<8x1xf32> to vector<8x8xf32>
    %163 = arith.mulf %162, %161 : vector<8x8xf32>
    %164 = arith.addf %163, %160 : vector<8x8xf32>
    %c0_87 = arith.constant 0 : index
    %c24_88 = arith.constant 24 : index
    %165 = vector.load %arg22[%c0_87, %c24_88] : memref<8x32xf32, #tpu.memory_space<vmem>>, vector<8x8xf32>
    tpu.vector_store %arg22[%c0_87, %c24_88], %164 {strides = array<i32>} : memref<8x32xf32, #tpu.memory_space<vmem>>, vector<8x8xf32>,
    %c3_89 = arith.constant 3 : index
    %c0_90 = arith.constant 0 : index
    %c0_91 = arith.constant 0 : index
    %166 = vector.load %arg20[%c3_89, %c0_90, %c0_91] : memref<4x8x1xf32, #tpu.memory_space<vmem>>, vector<1x8x1xf32>
    %167 = vector.shape_cast %166 : vector<1x8x1xf32> to vector<8x1xf32>
    %168 = vector.shape_cast %143 : vector<8x1xf32> to vector<1x8x1xf32>
    tpu.vector_store %arg20[%c3_89, %c0_90, %c0_91], %168 {strides = array<i32>} : memref<4x8x1xf32, #tpu.memory_space<vmem>>, vector<1x8x1xf32>,
    %c1_i32 = arith.constant 1 : i32
    %169 = arith.cmpi eq, %arg2, %c1_i32 : i32
    %170 = arith.extui %169 : i1 to i32
    %c0_i32_92 = arith.constant 0 : i32
    %171 = arith.cmpi ne, %170, %c0_i32_92 : i32
    scf.if %171 {
      %c0_93 = arith.constant 0 : index
      %c0_94 = arith.constant 0 : index
      %172 = vector.load %arg22[%c0_93, %c0_94] : memref<8x32xf32, #tpu.memory_space<vmem>>, vector<8x8xf32>
      %c0_95 = arith.constant 0 : index
      %c0_96 = arith.constant 0 : index
      %c0_97 = arith.constant 0 : index
      %173 = vector.load %arg21[%c0_95, %c0_96, %c0_97] : memref<4x8x1xf32, #tpu.memory_space<vmem>>, vector<1x8x1xf32>
      %174 = vector.shape_cast %173 : vector<1x8x1xf32> to vector<8x1xf32>
      %175 = tpu.reciprocal %174 {approx = true} : vector<8x1xf32> -> vector<8x1xf32>
      %176 = vector.broadcast %175 : vector<8x1xf32> to vector<8x8xf32>
      %177 = arith.mulf %172, %176 : vector<8x8xf32>
      %c0_98 = arith.constant 0 : index
      %c0_99 = arith.constant 0 : index
      %178 = vector.load %arg22[%c0_98, %c0_99] : memref<8x32xf32, #tpu.memory_space<vmem>>, vector<8x8xf32>
      tpu.vector_store %arg22[%c0_98, %c0_99], %177 {strides = array<i32>} : memref<8x32xf32, #tpu.memory_space<vmem>>, vector<8x8xf32>,
      %c0_100 = arith.constant 0 : index
      %c8_101 = arith.constant 8 : index
      %179 = vector.load %arg22[%c0_100, %c8_101] : memref<8x32xf32, #tpu.memory_space<vmem>>, vector<8x8xf32>
      %c1_102 = arith.constant 1 : index
      %c0_103 = arith.constant 0 : index
      %c0_104 = arith.constant 0 : index
      %180 = vector.load %arg21[%c1_102, %c0_103, %c0_104] : memref<4x8x1xf32, #tpu.memory_space<vmem>>, vector<1x8x1xf32>
      %181 = vector.shape_cast %180 : vector<1x8x1xf32> to vector<8x1xf32>
      %182 = tpu.reciprocal %181 {approx = true} : vector<8x1xf32> -> vector<8x1xf32>
      %183 = vector.broadcast %182 : vector<8x1xf32> to vector<8x8xf32>
      %184 = arith.mulf %179, %183 : vector<8x8xf32>
      %c0_105 = arith.constant 0 : index
      %c8_106 = arith.constant 8 : index
      %185 = vector.load %arg22[%c0_105, %c8_106] : memref<8x32xf32, #tpu.memory_space<vmem>>, vector<8x8xf32>
      tpu.vector_store %arg22[%c0_105, %c8_106], %184 {strides = array<i32>} : memref<8x32xf32, #tpu.memory_space<vmem>>, vector<8x8xf32>,
      %c0_107 = arith.constant 0 : index
      %c16_108 = arith.constant 16 : index
      %186 = vector.load %arg22[%c0_107, %c16_108] : memref<8x32xf32, #tpu.memory_space<vmem>>, vector<8x8xf32>
      %c2_109 = arith.constant 2 : index
      %c0_110 = arith.constant 0 : index
      %c0_111 = arith.constant 0 : index
      %187 = vector.load %arg21[%c2_109, %c0_110, %c0_111] : memref<4x8x1xf32, #tpu.memory_space<vmem>>, vector<1x8x1xf32>
      %188 = vector.shape_cast %187 : vector<1x8x1xf32> to vector<8x1xf32>
      %189 = tpu.reciprocal %188 {approx = true} : vector<8x1xf32> -> vector<8x1xf32>
      %190 = vector.broadcast %189 : vector<8x1xf32> to vector<8x8xf32>
      %191 = arith.mulf %186, %190 : vector<8x8xf32>
      %c0_112 = arith.constant 0 : index
      %c16_113 = arith.constant 16 : index
      %192 = vector.load %arg22[%c0_112, %c16_113] : memref<8x32xf32, #tpu.memory_space<vmem>>, vector<8x8xf32>
      tpu.vector_store %arg22[%c0_112, %c16_113], %191 {strides = array<i32>} : memref<8x32xf32, #tpu.memory_space<vmem>>, vector<8x8xf32>,
      %c0_114 = arith.constant 0 : index
      %c24_115 = arith.constant 24 : index
      %193 = vector.load %arg22[%c0_114, %c24_115] : memref<8x32xf32, #tpu.memory_space<vmem>>, vector<8x8xf32>
      %c3_116 = arith.constant 3 : index
      %c0_117 = arith.constant 0 : index
      %c0_118 = arith.constant 0 : index
      %194 = vector.load %arg21[%c3_116, %c0_117, %c0_118] : memref<4x8x1xf32, #tpu.memory_space<vmem>>, vector<1x8x1xf32>
      %195 = vector.shape_cast %194 : vector<1x8x1xf32> to vector<8x1xf32>
      %196 = tpu.reciprocal %195 {approx = true} : vector<8x1xf32> -> vector<8x1xf32>
      %197 = vector.broadcast %196 : vector<8x1xf32> to vector<8x8xf32>
      %198 = arith.mulf %193, %197 : vector<8x8xf32>
      %c0_119 = arith.constant 0 : index
      %c24_120 = arith.constant 24 : index
      %199 = vector.load %arg22[%c0_119, %c24_120] : memref<8x32xf32, #tpu.memory_space<vmem>>, vector<8x8xf32>
      tpu.vector_store %arg22[%c0_119, %c24_120], %198 {strides = array<i32>} : memref<8x32xf32, #tpu.memory_space<vmem>>, vector<8x8xf32>,
      %c0_121 = arith.constant 0 : index
      %c0_122 = arith.constant 0 : index
      %c0_123 = arith.constant 0 : index
      %200 = vector.load %arg4[%c0_121, %c0_122, %c0_123] : memref<1x8x32xf32, #tpu.memory_space<vmem>>, vector<1x8x32xf32>
      %201 = vector.shape_cast %200 : vector<1x8x32xf32> to vector<8x32xf32>
      %c0_124 = arith.constant 0 : index
      %c0_125 = arith.constant 0 : index
      %202 = vector.load %arg22[%c0_124, %c0_125] : memref<8x32xf32, #tpu.memory_space<vmem>>, vector<8x32xf32>
      %203 = arith.truncf %202 : vector<8x32xf32> to vector<8x32xbf16>
      %c0_126 = arith.constant 0 : index
      %c0_127 = arith.constant 0 : index
      %204 = vector.load %arg9[%c0_126, %c0_127] : memref<32x32xbf16, #tpu.memory_space<vmem>>, vector<32x32xbf16>
      %cst_128 = arith.constant dense<0.000000e+00> : vector<8x32xf32>
      %205 = tpu.matmul %203, %204, %cst_128 {dimension_numbers = #tpu.dot_dimension_numbers<[1], [0], [0], [1], [0, 0, 1, 1], [], []>} : vector<8x32xbf16>, vector<32x32xbf16>, vector<8x32xf32> -> vector<8x32xf32>
      %206 = arith.addf %201, %205 : vector<8x32xf32>
      %c0_129 = arith.constant 0 : index
      %c0_130 = arith.constant 0 : index
      %207 = vector.load %arg10[%c0_129, %c0_130] : memref<1x32xf32, #tpu.memory_space<vmem>>, vector<1x32xf32>
      %c0_131 = arith.constant 0 : index
      %c0_132 = arith.constant 0 : index
      %208 = vector.load %arg11[%c0_131, %c0_132] : memref<1x32xf32, #tpu.memory_space<vmem>>, vector<1x32xf32>
      %cst_133 = arith.constant dense<0.000000e+00> : vector<8xf32>
      %209 = vector.multi_reduction <add>, %206, %cst_133 [1] : vector<8x32xf32> to vector<8xf32>
      %210 = vector.shape_cast %209 : vector<8xf32> to vector<8x1xf32>
      %cst_134 = arith.constant 3.200000e+01 : f32
      %211 = vector.broadcast %cst_134 : f32 to vector<8x1xf32>
      %212 = arith.divf %210, %211 : vector<8x1xf32>
      %213 = vector.broadcast %212 : vector<8x1xf32> to vector<8x32xf32>
      %214 = arith.subf %206, %213 : vector<8x32xf32>
      %215 = arith.mulf %214, %214 : vector<8x32xf32>
      %cst_135 = arith.constant dense<0.000000e+00> : vector<8xf32>
      %216 = vector.multi_reduction <add>, %215, %cst_135 [1] : vector<8x32xf32> to vector<8xf32>
      %217 = vector.shape_cast %216 : vector<8xf32> to vector<8x1xf32>
      %cst_136 = arith.constant 3.200000e+01 : f32
      %218 = vector.broadcast %cst_136 : f32 to vector<8x1xf32>
      %219 = arith.divf %217, %218 : vector<8x1xf32>
      %220 = vector.broadcast %212 : vector<8x1xf32> to vector<8x32xf32>
      %221 = arith.subf %206, %220 : vector<8x32xf32>
      %cst_137 = arith.constant 9.99999974E-6 : f32
      %222 = vector.broadcast %cst_137 : f32 to vector<8x1xf32>
      %223 = arith.addf %219, %222 : vector<8x1xf32>
      %224 = math.rsqrt %223 : vector<8x1xf32>
      %225 = vector.broadcast %224 : vector<8x1xf32> to vector<8x32xf32>
      %226 = arith.mulf %221, %225 : vector<8x32xf32>
      %227 = vector.broadcast %207 : vector<1x32xf32> to vector<8x32xf32>
      %228 = arith.mulf %226, %227 : vector<8x32xf32>
      %229 = vector.broadcast %208 : vector<1x32xf32> to vector<8x32xf32>
      %230 = arith.addf %228, %229 : vector<8x32xf32>
      %231 = arith.truncf %230 : vector<8x32xf32> to vector<8x32xbf16>
      %c0_138 = arith.constant 0 : index
      %c0_139 = arith.constant 0 : index
      %232 = vector.load %arg12[%c0_138, %c0_139] : memref<32x64xbf16, #tpu.memory_space<vmem>>, vector<32x64xbf16>
      %cst_140 = arith.constant dense<0.000000e+00> : vector<8x64xf32>
      %233 = tpu.matmul %231, %232, %cst_140 {dimension_numbers = #tpu.dot_dimension_numbers<[1], [0], [0], [1], [0, 0, 1, 1], [], []>} : vector<8x32xbf16>, vector<32x64xbf16>, vector<8x64xf32> -> vector<8x64xf32>
      %c0_141 = arith.constant 0 : index
      %c0_142 = arith.constant 0 : index
      %234 = vector.load %arg13[%c0_141, %c0_142] : memref<1x64xf32, #tpu.memory_space<vmem>>, vector<1x64xf32>
      %235 = vector.broadcast %234 : vector<1x64xf32> to vector<8x64xf32>
      %236 = arith.addf %233, %235 : vector<8x64xf32>
      %cst_143 = arith.constant 0.000000e+00 : f32
      %237 = vector.broadcast %cst_143 : f32 to vector<8x64xf32>
      %238 = arith.maximumf %236, %237 : vector<8x64xf32>
      %239 = arith.truncf %238 : vector<8x64xf32> to vector<8x64xbf16>
      %c0_144 = arith.constant 0 : index
      %c0_145 = arith.constant 0 : index
      %240 = vector.load %arg14[%c0_144, %c0_145] : memref<64x32xbf16, #tpu.memory_space<vmem>>, vector<64x32xbf16>
      %cst_146 = arith.constant dense<0.000000e+00> : vector<8x32xf32>
      %241 = tpu.matmul %239, %240, %cst_146 {dimension_numbers = #tpu.dot_dimension_numbers<[1], [0], [0], [1], [0, 0, 1, 1], [], []>} : vector<8x64xbf16>, vector<64x32xbf16>, vector<8x32xf32> -> vector<8x32xf32>
      %c0_147 = arith.constant 0 : index
      %c0_148 = arith.constant 0 : index
      %242 = vector.load %arg15[%c0_147, %c0_148] : memref<1x32xf32, #tpu.memory_space<vmem>>, vector<1x32xf32>
      %243 = vector.broadcast %242 : vector<1x32xf32> to vector<8x32xf32>
      %244 = arith.addf %241, %243 : vector<8x32xf32>
      %245 = arith.addf %230, %244 : vector<8x32xf32>
      %c0_149 = arith.constant 0 : index
      %c0_150 = arith.constant 0 : index
      %246 = vector.load %arg16[%c0_149, %c0_150] : memref<1x32xf32, #tpu.memory_space<vmem>>, vector<1x32xf32>
      %c0_151 = arith.constant 0 : index
      %c0_152 = arith.constant 0 : index
      %247 = vector.load %arg17[%c0_151, %c0_152] : memref<1x32xf32, #tpu.memory_space<vmem>>, vector<1x32xf32>
      %cst_153 = arith.constant dense<0.000000e+00> : vector<8xf32>
      %248 = vector.multi_reduction <add>, %245, %cst_153 [1] : vector<8x32xf32> to vector<8xf32>
      %249 = vector.shape_cast %248 : vector<8xf32> to vector<8x1xf32>
      %cst_154 = arith.constant 3.200000e+01 : f32
      %250 = vector.broadcast %cst_154 : f32 to vector<8x1xf32>
      %251 = arith.divf %249, %250 : vector<8x1xf32>
      %252 = vector.broadcast %251 : vector<8x1xf32> to vector<8x32xf32>
      %253 = arith.subf %245, %252 : vector<8x32xf32>
      %254 = arith.mulf %253, %253 : vector<8x32xf32>
      %cst_155 = arith.constant dense<0.000000e+00> : vector<8xf32>
      %255 = vector.multi_reduction <add>, %254, %cst_155 [1] : vector<8x32xf32> to vector<8xf32>
      %256 = vector.shape_cast %255 : vector<8xf32> to vector<8x1xf32>
      %cst_156 = arith.constant 3.200000e+01 : f32
      %257 = vector.broadcast %cst_156 : f32 to vector<8x1xf32>
      %258 = arith.divf %256, %257 : vector<8x1xf32>
      %259 = vector.broadcast %251 : vector<8x1xf32> to vector<8x32xf32>
      %260 = arith.subf %245, %259 : vector<8x32xf32>
      %cst_157 = arith.constant 9.99999974E-6 : f32
      %261 = vector.broadcast %cst_157 : f32 to vector<8x1xf32>
      %262 = arith.addf %258, %261 : vector<8x1xf32>
      %263 = math.rsqrt %262 : vector<8x1xf32>
      %264 = vector.broadcast %263 : vector<8x1xf32> to vector<8x32xf32>
      %265 = arith.mulf %260, %264 : vector<8x32xf32>
      %266 = vector.broadcast %246 : vector<1x32xf32> to vector<8x32xf32>
      %267 = arith.mulf %265, %266 : vector<8x32xf32>
      %268 = vector.broadcast %247 : vector<1x32xf32> to vector<8x32xf32>
      %269 = arith.addf %267, %268 : vector<8x32xf32>
      %c0_158 = arith.constant 0 : index
      %c0_159 = arith.constant 0 : index
      %c0_160 = arith.constant 0 : index
      %270 = vector.load %arg18[%c0_158, %c0_159, %c0_160] : memref<1x8x32xf32, #tpu.memory_space<vmem>>, vector<1x8x32xf32>
      %271 = vector.shape_cast %270 : vector<1x8x32xf32> to vector<8x32xf32>
      %272 = vector.shape_cast %269 : vector<8x32xf32> to vector<1x8x32xf32>
      tpu.vector_store %arg18[%c0_158, %c0_159, %c0_160], %272 {strides = array<i32>} : memref<1x8x32xf32, #tpu.memory_space<vmem>>, vector<1x8x32xf32>,
    } else {
    }
    return
  }
  func.func @transform_0(%arg0: i32, %arg1: i32, %arg2: i32, %arg3: memref<2xi32, #tpu.memory_space<smem>>) -> (i32, i32, i32) {
    %c0_i32 = arith.constant 0 : i32
    %c0_i32_0 = arith.constant 0 : i32
    return %arg0, %arg1, %c0_i32 : i32, i32, i32
  }
  func.func @transform_1(%arg0: i32, %arg1: i32, %arg2: i32, %arg3: memref<2xi32, #tpu.memory_space<smem>>) -> (i32, i32, i32) {
    %c0_i32 = arith.constant 0 : i32
    %c0_i32_0 = arith.constant 0 : i32
    return %arg0, %arg2, %c0_i32 : i32, i32, i32
  }
  func.func @transform_2(%arg0: i32, %arg1: i32, %arg2: i32, %arg3: memref<2xi32, #tpu.memory_space<smem>>) -> (i32, i32) {
    %c0_i32 = arith.constant 0 : i32
    %c0_i32_0 = arith.constant 0 : i32
    %c0_i32_1 = arith.constant 0 : i32
    return %c0_i32, %c0_i32_0 : i32, i32
  }
  func.func @transform_3(%arg0: i32, %arg1: i32, %arg2: i32, %arg3: memref<2xi32, #tpu.memory_space<smem>>) -> (i32, i32) {
    %c0_i32 = arith.constant 0 : i32
    %c0_i32_0 = arith.constant 0 : i32
    %c0_i32_1 = arith.constant 0 : i32
    return %c0_i32, %c0_i32_0 : i32, i32
  }
  func.func @transform_4(%arg0: i32, %arg1: i32, %arg2: i32, %arg3: memref<2xi32, #tpu.memory_space<smem>>) -> (i32, i32) {
    %c0_i32 = arith.constant 0 : i32
    %c0_i32_0 = arith.constant 0 : i32
    %c0_i32_1 = arith.constant 0 : i32
    return %c0_i32, %c0_i32_0 : i32, i32
  }
  func.func @transform_5(%arg0: i32, %arg1: i32, %arg2: i32, %arg3: memref<2xi32, #tpu.memory_space<smem>>) -> (i32, i32) {
    %c0_i32 = arith.constant 0 : i32
    %c0_i32_0 = arith.constant 0 : i32
    %c0_i32_1 = arith.constant 0 : i32
    return %c0_i32, %c0_i32_0 : i32, i32
  }
  func.func @transform_6(%arg0: i32, %arg1: i32, %arg2: i32, %arg3: memref<2xi32, #tpu.memory_space<smem>>) -> (i32, i32) {
    %c0_i32 = arith.constant 0 : i32
    %c0_i32_0 = arith.constant 0 : i32
    %c0_i32_1 = arith.constant 0 : i32
    return %c0_i32, %c0_i32_0 : i32, i32
  }
  func.func @transform_7(%arg0: i32, %arg1: i32, %arg2: i32, %arg3: memref<2xi32, #tpu.memory_space<smem>>) -> (i32, i32) {
    %c0_i32 = arith.constant 0 : i32
    %c0_i32_0 = arith.constant 0 : i32
    %c0_i32_1 = arith.constant 0 : i32
    return %c0_i32, %c0_i32_0 : i32, i32
  }
  func.func @transform_8(%arg0: i32, %arg1: i32, %arg2: i32, %arg3: memref<2xi32, #tpu.memory_space<smem>>) -> (i32, i32) {
    %c0_i32 = arith.constant 0 : i32
    %c0_i32_0 = arith.constant 0 : i32
    %c0_i32_1 = arith.constant 0 : i32
    return %c0_i32, %c0_i32_0 : i32, i32
  }
  func.func @transform_9(%arg0: i32, %arg1: i32, %arg2: i32, %arg3: memref<2xi32, #tpu.memory_space<smem>>) -> (i32, i32) {
    %c0_i32 = arith.constant 0 : i32
    %c0_i32_0 = arith.constant 0 : i32
    %c0_i32_1 = arith.constant 0 : i32
    return %c0_i32, %c0_i32_0 : i32, i32
  }
  func.func @transform_10(%arg0: i32, %arg1: i32, %arg2: i32, %arg3: memref<2xi32, #tpu.memory_space<smem>>) -> (i32, i32) {
    %c0_i32 = arith.constant 0 : i32
    %c0_i32_0 = arith.constant 0 : i32
    %c0_i32_1 = arith.constant 0 : i32
    return %c0_i32, %c0_i32_0 : i32, i32
  }
  func.func @transform_11(%arg0: i32, %arg1: i32, %arg2: i32, %arg3: memref<2xi32, #tpu.memory_space<smem>>) -> (i32, i32) {
    %c0_i32 = arith.constant 0 : i32
    %c0_i32_0 = arith.constant 0 : i32
    %c0_i32_1 = arith.constant 0 : i32
    return %c0_i32, %c0_i32_0 : i32, i32
  }
  func.func @transform_12(%arg0: i32, %arg1: i32, %arg2: i32, %arg3: memref<2xi32, #tpu.memory_space<smem>>) -> (i32, i32) {
    %c0_i32 = arith.constant 0 : i32
    %c0_i32_0 = arith.constant 0 : i32
    %c0_i32_1 = arith.constant 0 : i32
    return %c0_i32, %c0_i32_0 : i32, i32
  }
  func.func @transform_13(%arg0: i32, %arg1: i32, %arg2: i32, %arg3: memref<2xi32, #tpu.memory_space<smem>>) -> (i32, i32) {
    %c0_i32 = arith.constant 0 : i32
    %c0_i32_0 = arith.constant 0 : i32
    %c0_i32_1 = arith.constant 0 : i32
    return %c0_i32, %c0_i32_0 : i32, i32
  }
  func.func @transform_14(%arg0: i32, %arg1: i32, %arg2: i32, %arg3: memref<2xi32, #tpu.memory_space<smem>>) -> (i32, i32, i32) {
    %c0_i32 = arith.constant 0 : i32
    %c0_i32_0 = arith.constant 0 : i32
    return %arg0, %arg1, %c0_i32 : i32, i32, i32
  }
}

</mosaic_0001>

<llo_original>
// kernel: tpu_custom_call.1
$region0: #{tpu_custom_call.1}
  #allocation0 [shape = 'u32[]', space=smem, size = 0x4, offset = 0x4, fixed_abs, tag = 'smem constant byte address 0x4 - core index']
  #allocation1 [shape = 'u32[144,128]{1,0:T(1,128)}', space=vmem, size = 0x12000, scoped, tag = 'internal scratch']
  #allocation2 [shape = 'bf16[8,32]{1,0:T(8,128)(2,1)}', space=vmem, size = 0x800, scoped, tag = 'scratch operand']
  #allocation3 [shape = 'f32[4,8,1]{2,1,0:T(8,128)}', space=vmem, size = 0x4000, scoped, tag = 'scratch operand']
  #allocation4 [shape = 'f32[4,8,1]{2,1,0:T(8,128)}', space=vmem, size = 0x4000, scoped, tag = 'scratch operand']
  #allocation5 [shape = 'f32[8,32]{1,0:T(8,128)}', space=vmem, size = 0x1000, scoped, tag = 'scratch operand']
  #allocation6 [shape = 's32[1]{0}', space=sflag, size = 0x4, scoped, tag = 'scoped memory for tpu_custom_call.1']
  #allocation7 [shape = 'u8[512]{0}', space=smem, size = 0x200, scoped, tag = 'prefetched SMEM operand 0']
  %s0 = inlined_call_operand.vmem [shape: s32[2], index: 0, kind: input, shape index: {}]
  %s1 = inlined_call_operand.vmem [shape: f32[2,16,32], index: 1, kind: input, shape index: {}]
  %s2 = inlined_call_operand.hbm [shape: f32[2,16,32], index: 2, kind: input, shape index: {}]
  %s3 = inlined_call_operand.vmem [shape: bf16[32,32], index: 3, kind: input, shape index: {}]
  %s4 = inlined_call_operand.hbm [shape: bf16[32,32], index: 4, kind: input, shape index: {}]
  %s5 = inlined_call_operand.hbm [shape: bf16[32,32], index: 5, kind: input, shape index: {}]
  %s6 = inlined_call_operand.hbm [shape: bf16[32,32], index: 6, kind: input, shape index: {}]
  %s7 = inlined_call_operand.vmem [shape: f32[1,32], index: 7, kind: input, shape index: {}]
  %s8 = inlined_call_operand.vmem [shape: f32[1,32], index: 8, kind: input, shape index: {}]
  %s9 = inlined_call_operand.hbm [shape: bf16[32,64], index: 9, kind: input, shape index: {}]
  %s10 = inlined_call_operand.vmem [shape: f32[1,64], index: 10, kind: input, shape index: {}]
  %s11 = inlined_call_operand.vmem [shape: bf16[64,32], index: 11, kind: input, shape index: {}]
  %s12 = inlined_call_operand.vmem [shape: f32[1,32], index: 12, kind: input, shape index: {}]
  %s13 = inlined_call_operand.vmem [shape: f32[1,32], index: 13, kind: input, shape index: {}]
  %s14 = inlined_call_operand.vmem [shape: f32[1,32], index: 14, kind: input, shape index: {}]
  %s15 = inlined_call_operand.hbm [shape: f32[2,16,32], index: 15, kind: output, shape index: {}]
  %s16 = sld [smem:[#allocation0]]
  $region117: #{tpu_custom_call.1} parent=0
    _
  %s18 = ssub.s32 1, %s16
  %s19 = scalar_select 0, %s18, %s16
  %s20 = sshll.u32 %s0, 4
  %s21 = int_to_ptr.vmem [resolvable:$true] %s20
  %23 = dma.vmem_to_smem %s21, 16, [#allocation7], [#allocation6]
  %24 = dma.done [#allocation6], 16
  %25 = sfence
  $region1: #{tpu_custom_call.1} parent=0
    #allocation8 [shape = 'u8[8192]{0}', space=vmem, size = 0x2000, scoped, tag = 'input window, operand 2']
    #allocation9 [shape = 's32[2]{0}', space=sflag, size = 0x8, scoped, tag = 'scoped memory for tpu_custom_call.1']
    #allocation10 [shape = 's32[2]{0}', space=sflag, size = 0x8, scoped, tag = 'scoped memory for tpu_custom_call.1']
    #allocation11 [shape = 'u8[8192]{0}', space=vmem, size = 0x2000, scoped, tag = 'input window, operand 4, single buffered']
    #allocation12 [shape = 's32[1]{0}', space=sflag, size = 0x4, scoped, tag = 'scoped memory for tpu_custom_call.1']
    #allocation13 [shape = 'u8[8192]{0}', space=vmem, size = 0x2000, scoped, tag = 'input window, operand 5, single buffered']
    #allocation14 [shape = 'u8[8192]{0}', space=vmem, size = 0x2000, scoped, tag = 'input window, operand 6, single buffered']
    #allocation15 [shape = 's32[1]{0}', space=sflag, size = 0x4, scoped, tag = 'scoped memory for tpu_custom_call.1']
    #allocation16 [shape = 'u8[8192]{0}', space=vmem, size = 0x2000, scoped, tag = 'input window, operand 9, single buffered']
    #allocation17 [shape = 'u8[8192]{0}', space=vmem, size = 0x2000, scoped, tag = 'output window, operand 0']
    %26 = vsyncpa [#allocation9], 0
    %s27 = scalar_lea.sflag [#allocation9], 1
    %28 = vsyncpa %s27, 0
    %29 = vsyncpa [#allocation12], 0
    %30 = vsyncpa [#allocation15], 0
    %31 = vsyncpa [#allocation10], 0
    %s32 = scalar_lea.sflag [#allocation10], 1
    %33 = vsyncpa %s32, 0
    loop: start=0, step=1, limit=10
    $region2: #{tpu_custom_call.1} parent=1 // loop_pre_header
      _
    $region3: #{tpu_custom_call.1} parent=1 // loop_header
      %s35 = sphi 0, %s39
      %p36 = scmp.ge.s32.totalorder %s35, 10
      %s42 = sphi 0, %s61
      %s43 = sphi 0, %s57
      %s44 = sphi 0, %s53
      %s45 = sphi 0, %s42
      %s46 = sphi 0, %s43
      %s47 = sphi 0, %s44
      %s48 = sphi 0, %s45
      %s49 = sphi 0, %s46
      %s50 = sphi 0, %s47
      %s66 = sphi 0, %s68
      %s69 = sphi 0, %s66
      %s70 = sphi 0, %s69
      %s86 = sphi 0, %s70
      %s94 = sphi 0, %s96
      %s97 = sphi 0, %s94
      %s98 = sphi 0, %s97
      %s114 = sphi 0, %s98
      %s118 = sphi 0, %s118
      %s120 = sphi 0, %s118
      %s121 = sphi 0, %s120
      %s135 = sphi 0, %s121
      %s139 = sphi 0, %s139
      %s141 = sphi 0, %s139
      %s142 = sphi 0, %s141
      %s156 = sphi 0, %s142
      %s160 = sphi 0, %s160
      %s162 = sphi 0, %s160
      %s163 = sphi 0, %s162
      %s177 = sphi 0, %s163
      %s181 = sphi 0, %s181
      %s183 = sphi 0, %s181
      %s184 = sphi 0, %s183
      %s198 = sphi 0, %s184
      %s202 = sphi 0, %s202
      %s204 = sphi 0, %s202
      %s205 = sphi 0, %s204
      %s219 = sphi 0, %s205
      %s223 = sphi 0, %s223
      %s225 = sphi 0, %s223
      %s226 = sphi 0, %s225
      %s240 = sphi 0, %s226
      %s244 = sphi 0, %s244
      %s246 = sphi 0, %s244
      %s247 = sphi 0, %s246
      %s261 = sphi 0, %s247
      %s265 = sphi 0, %s265
      %s267 = sphi 0, %s265
      %s268 = sphi 0, %s267
      %s282 = sphi 0, %s268
      %s286 = sphi 0, %s286
      %s288 = sphi 0, %s286
      %s289 = sphi 0, %s288
      %s303 = sphi 0, %s289
      %s307 = sphi 0, %s307
      %s309 = sphi 0, %s307
      %s310 = sphi 0, %s309
      %s324 = sphi 0, %s310
      %s328 = sphi 0, %s328
      %s330 = sphi 0, %s328
      %s331 = sphi 0, %s330
      %s345 = sphi 0, %s331
      %s349 = sphi 0, %s349
      %s351 = sphi 0, %s349
      %s352 = sphi 0, %s351
      %s366 = sphi 0, %s352
      %s374 = sphi 0, %s376
      %s377 = sphi 0, %s374
      %s378 = sphi 0, %s377
      %s394 = sphi 0, %s378
    $region4: #{tpu_custom_call.1} parent=1 // loop_header_branch
      %38 = sbr.rel (%p36) target = $region8
    $region5: #{tpu_custom_call.1} parent=1 // loop_body
      %s40 = ssub.s32 %s35, 1
      %s41 = ssub.s32 %s35, 2
      %s51 = sadd.s32 1, %s44
      %p52 = scmp.ge.s32.totalorder %s51, 2
      %s53 = scalar_select %p52, 0, %s51
      %s54 = sadd.s32 1, %s43
      %s55 = scalar_select %p52, %s54, %s43
      %p56 = scmp.ge.s32.totalorder %s55, 2
      %s57 = scalar_select %p56, 0, %s55
      %s58 = sadd.s32 1, %s42
      %s59 = scalar_select %p56, %s58, %s42
      %p60 = scmp.ge.s32.totalorder %s59, 2
      %s61 = scalar_select %p60, 0, %s59
      %s62 = ssub.s32 %s42, %s61
      %s63 = ssub.s32 %s43, %s57
      %s64 = sor.u32 %s62, %s63
      %p65 = scmp.eq.s32.totalorder %s64, 0
      %s67 = sadd.s32 %s66, 1
      %s68 = scalar_select %p65, %s66, %s67
      %p71 = pneg %p65
      %p72 = scmp.eq.s32.totalorder %s35, 7
      %p73 = por %p71, %p72
      %p74 = scmp.ne.s32.totalorder %s66, %s69
      %p75 = scmp.eq.s32.totalorder %s35, 0
      %p76 = por %p74, %p75
      %p77 = scmp.ne.s32.totalorder %s66, %s69
      %p78 = scmp.eq.s32.totalorder %s40, 7
      %p79 = por %p77, %p78
      %p80 = scmp.ne.s32.totalorder %s69, %s70
      %p81 = scmp.eq.s32.totalorder %s40, 0
      %p82 = por %p80, %p81
      %p83 = scmp.ne.s32.totalorder %s69, %s70
      %p84 = scmp.eq.s32.totalorder %s41, 7
      %p85 = por %p83, %p84
      %p87 = scmp.ne.s32.totalorder %s70, %s86
      %p88 = scmp.eq.s32.totalorder %s41, 0
      %p89 = por %p87, %p88
      %s90 = ssub.s32 %s42, %s61
      %s91 = ssub.s32 %s44, %s53
      %s92 = sor.u32 %s90, %s91
      %p93 = scmp.eq.s32.totalorder %s92, 0
      %s95 = sadd.s32 %s94, 1
      %s96 = scalar_select %p93, %s94, %s95
      %p99 = pneg %p93
      %p100 = scmp.eq.s32.totalorder %s35, 7
      %p101 = por %p99, %p100
      %p102 = scmp.ne.s32.totalorder %s94, %s97
      %p103 = scmp.eq.s32.totalorder %s35, 0
      %p104 = por %p102, %p103
      %p105 = scmp.ne.s32.totalorder %s94, %s97
      %p106 = scmp.eq.s32.totalorder %s40, 7
      %p107 = por %p105, %p106
      %p108 = scmp.ne.s32.totalorder %s97, %s98
      %p109 = scmp.eq.s32.totalorder %s40, 0
      %p110 = por %p108, %p109
      %p111 = scmp.ne.s32.totalorder %s97, %s98
      %p112 = scmp.eq.s32.totalorder %s41, 7
      %p113 = por %p111, %p112
      %p115 = scmp.ne.s32.totalorder %s98, %s114
      %p116 = scmp.eq.s32.totalorder %s41, 0
      %p117 = por %p115, %p116
      %s119 = sadd.s32 %s118, 1
      %p122 = scmp.eq.s32.totalorder %s35, 7
      %p123 = scmp.ne.s32.totalorder %s118, %s120
      %p124 = scmp.eq.s32.totalorder %s35, 0
      %p125 = por %p123, %p124
      %p126 = scmp.ne.s32.totalorder %s118, %s120
      %p127 = scmp.eq.s32.totalorder %s40, 7
      %p128 = por %p126, %p127
      %p129 = scmp.ne.s32.totalorder %s120, %s121
      %p130 = scmp.eq.s32.totalorder %s40, 0
      %p131 = por %p129, %p130
      %p132 = scmp.ne.s32.totalorder %s120, %s121
      %p133 = scmp.eq.s32.totalorder %s41, 7
      %p134 = por %p132, %p133
      %p136 = scmp.ne.s32.totalorder %s121, %s135
      %p137 = scmp.eq.s32.totalorder %s41, 0
      %p138 = por %p136, %p137
      %s140 = sadd.s32 %s139, 1
      %p143 = scmp.eq.s32.totalorder %s35, 7
      %p144 = scmp.ne.s32.totalorder %s139, %s141
      %p145 = scmp.eq.s32.totalorder %s35, 0
      %p146 = por %p144, %p145
      %p147 = scmp.ne.s32.totalorder %s139, %s141
      %p148 = scmp.eq.s32.totalorder %s40, 7
      %p149 = por %p147, %p148
      %p150 = scmp.ne.s32.totalorder %s141, %s142
      %p151 = scmp.eq.s32.totalorder %s40, 0
      %p152 = por %p150, %p151
      %p153 = scmp.ne.s32.totalorder %s141, %s142
      %p154 = scmp.eq.s32.totalorder %s41, 7
      %p155 = por %p153, %p154
      %p157 = scmp.ne.s32.totalorder %s142, %s156
      %p158 = scmp.eq.s32.totalorder %s41, 0
      %p159 = por %p157, %p158
      %s161 = sadd.s32 %s160, 1
      %p164 = scmp.eq.s32.totalorder %s35, 7
      %p165 = scmp.ne.s32.totalorder %s160, %s162
      %p166 = scmp.eq.s32.totalorder %s35, 0
      %p167 = por %p165, %p166
      %p168 = scmp.ne.s32.totalorder %s160, %s162
      %p169 = scmp.eq.s32.totalorder %s40, 7
      %p170 = por %p168, %p169
      %p171 = scmp.ne.s32.totalorder %s162, %s163
      %p172 = scmp.eq.s32.totalorder %s40, 0
      %p173 = por %p171, %p172
      %p174 = scmp.ne.s32.totalorder %s162, %s163
      %p175 = scmp.eq.s32.totalorder %s41, 7
      %p176 = por %p174, %p175
      %p178 = scmp.ne.s32.totalorder %s163, %s177
      %p179 = scmp.eq.s32.totalorder %s41, 0
      %p180 = por %p178, %p179
      %s182 = sadd.s32 %s181, 1
      %p185 = scmp.eq.s32.totalorder %s35, 7
      %p186 = scmp.ne.s32.totalorder %s181, %s183
      %p187 = scmp.eq.s32.totalorder %s35, 0
      %p188 = por %p186, %p187
      %p189 = scmp.ne.s32.totalorder %s181, %s183
      %p190 = scmp.eq.s32.totalorder %s40, 7
      %p191 = por %p189, %p190
      %p192 = scmp.ne.s32.totalorder %s183, %s184
      %p193 = scmp.eq.s32.totalorder %s40, 0
      %p194 = por %p192, %p193
      %p195 = scmp.ne.s32.totalorder %s183, %s184
      %p196 = scmp.eq.s32.totalorder %s41, 7
      %p197 = por %p195, %p196
      %p199 = scmp.ne.s32.totalorder %s184, %s198
      %p200 = scmp.eq.s32.totalorder %s41, 0
      %p201 = por %p199, %p200
      %s203 = sadd.s32 %s202, 1
      %p206 = scmp.eq.s32.totalorder %s35, 7
      %p207 = scmp.ne.s32.totalorder %s202, %s204
      %p208 = scmp.eq.s32.totalorder %s35, 0
      %p209 = por %p207, %p208
      %p210 = scmp.ne.s32.totalorder %s202, %s204
      %p211 = scmp.eq.s32.totalorder %s40, 7
      %p212 = por %p210, %p211
      %p213 = scmp.ne.s32.totalorder %s204, %s205
      %p214 = scmp.eq.s32.totalorder %s40, 0
      %p215 = por %p213, %p214
      %p216 = scmp.ne.s32.totalorder %s204, %s205
      %p217 = scmp.eq.s32.totalorder %s41, 7
      %p218 = por %p216, %p217
      %p220 = scmp.ne.s32.totalorder %s205, %s219
      %p221 = scmp.eq.s32.totalorder %s41, 0
      %p222 = por %p220, %p221
      %s224 = sadd.s32 %s223, 1
      %p227 = scmp.eq.s32.totalorder %s35, 7
      %p228 = scmp.ne.s32.totalorder %s223, %s225
      %p229 = scmp.eq.s32.totalorder %s35, 0
      %p230 = por %p228, %p229
      %p231 = scmp.ne.s32.totalorder %s223, %s225
      %p232 = scmp.eq.s32.totalorder %s40, 7
      %p233 = por %p231, %p232
      %p234 = scmp.ne.s32.totalorder %s225, %s226
      %p235 = scmp.eq.s32.totalorder %s40, 0
      %p236 = por %p234, %p235
      %p237 = scmp.ne.s32.totalorder %s225, %s226
      %p238 = scmp.eq.s32.totalorder %s41, 7
      %p239 = por %p237, %p238
      %p241 = scmp.ne.s32.totalorder %s226, %s240
      %p242 = scmp.eq.s32.totalorder %s41, 0
      %p243 = por %p241, %p242
      %s245 = sadd.s32 %s244, 1
      %p248 = scmp.eq.s32.totalorder %s35, 7
      %p249 = scmp.ne.s32.totalorder %s244, %s246
      %p250 = scmp.eq.s32.totalorder %s35, 0
      %p251 = por %p249, %p250
      %p252 = scmp.ne.s32.totalorder %s244, %s246
      %p253 = scmp.eq.s32.totalorder %s40, 7
      %p254 = por %p252, %p253
      %p255 = scmp.ne.s32.totalorder %s246, %s247
      %p256 = scmp.eq.s32.totalorder %s40, 0
      %p257 = por %p255, %p256
      %p258 = scmp.ne.s32.totalorder %s246, %s247
      %p259 = scmp.eq.s32.totalorder %s41, 7
      %p260 = por %p258, %p259
      %p262 = scmp.ne.s32.totalorder %s247, %s261
      %p263 = scmp.eq.s32.totalorder %s41, 0
      %p264 = por %p262, %p263
      %s266 = sadd.s32 %s265, 1
      %p269 = scmp.eq.s32.totalorder %s35, 7
      %p270 = scmp.ne.s32.totalorder %s265, %s267
      %p271 = scmp.eq.s32.totalorder %s35, 0
      %p272 = por %p270, %p271
      %p273 = scmp.ne.s32.totalorder %s265, %s267
      %p274 = scmp.eq.s32.totalorder %s40, 7
      %p275 = por %p273, %p274
      %p276 = scmp.ne.s32.totalorder %s267, %s268
      %p277 = scmp.eq.s32.totalorder %s40, 0
      %p278 = por %p276, %p277
      %p279 = scmp.ne.s32.totalorder %s267, %s268
      %p280 = scmp.eq.s32.totalorder %s41, 7
      %p281 = por %p279, %p280
      %p283 = scmp.ne.s32.totalorder %s268, %s282
      %p284 = scmp.eq.s32.totalorder %s41, 0
      %p285 = por %p283, %p284
      %s287 = sadd.s32 %s286, 1
      %p290 = scmp.eq.s32.totalorder %s35, 7
      %p291 = scmp.ne.s32.totalorder %s286, %s288
      %p292 = scmp.eq.s32.totalorder %s35, 0
      %p293 = por %p291, %p292
      %p294 = scmp.ne.s32.totalorder %s286, %s288
      %p295 = scmp.eq.s32.totalorder %s40, 7
      %p296 = por %p294, %p295
      %p297 = scmp.ne.s32.totalorder %s288, %s289
      %p298 = scmp.eq.s32.totalorder %s40, 0
      %p299 = por %p297, %p298
      %p300 = scmp.ne.s32.totalorder %s288, %s289
      %p301 = scmp.eq.s32.totalorder %s41, 7
      %p302 = por %p300, %p301
      %p304 = scmp.ne.s32.totalorder %s289, %s303
      %p305 = scmp.eq.s32.totalorder %s41, 0
      %p306 = por %p304, %p305
      %s308 = sadd.s32 %s307, 1
      %p311 = scmp.eq.s32.totalorder %s35, 7
      %p312 = scmp.ne.s32.totalorder %s307, %s309
      %p313 = scmp.eq.s32.totalorder %s35, 0
      %p314 = por %p312, %p313
      %p315 = scmp.ne.s32.totalorder %s307, %s309
      %p316 = scmp.eq.s32.totalorder %s40, 7
      %p317 = por %p315, %p316
      %p318 = scmp.ne.s32.totalorder %s309, %s310
      %p319 = scmp.eq.s32.totalorder %s40, 0
      %p320 = por %p318, %p319
      %p321 = scmp.ne.s32.totalorder %s309, %s310
      %p322 = scmp.eq.s32.totalorder %s41, 7
      %p323 = por %p321, %p322
      %p325 = scmp.ne.s32.totalorder %s310, %s324
      %p326 = scmp.eq.s32.totalorder %s41, 0
      %p327 = por %p325, %p326
      %s329 = sadd.s32 %s328, 1
      %p332 = scmp.eq.s32.totalorder %s35, 7
      %p333 = scmp.ne.s32.totalorder %s328, %s330
      %p334 = scmp.eq.s32.totalorder %s35, 0
      %p335 = por %p333, %p334
      %p336 = scmp.ne.s32.totalorder %s328, %s330
      %p337 = scmp.eq.s32.totalorder %s40, 7
      %p338 = por %p336, %p337
      %p339 = scmp.ne.s32.totalorder %s330, %s331
      %p340 = scmp.eq.s32.totalorder %s40, 0
      %p341 = por %p339, %p340
      %p342 = scmp.ne.s32.totalorder %s330, %s331
      %p343 = scmp.eq.s32.totalorder %s41, 7
      %p344 = por %p342, %p343
      %p346 = scmp.ne.s32.totalorder %s331, %s345
      %p347 = scmp.eq.s32.totalorder %s41, 0
      %p348 = por %p346, %p347
      %s350 = sadd.s32 %s349, 1
      %p353 = scmp.eq.s32.totalorder %s35, 7
      %p354 = scmp.ne.s32.totalorder %s349, %s351
      %p355 = scmp.eq.s32.totalorder %s35, 0
      %p356 = por %p354, %p355
      %p357 = scmp.ne.s32.totalorder %s349, %s351
      %p358 = scmp.eq.s32.totalorder %s40, 7
      %p359 = por %p357, %p358
      %p360 = scmp.ne.s32.totalorder %s351, %s352
      %p361 = scmp.eq.s32.totalorder %s40, 0
      %p362 = por %p360, %p361
      %p363 = scmp.ne.s32.totalorder %s351, %s352
      %p364 = scmp.eq.s32.totalorder %s41, 7
      %p365 = por %p363, %p364
      %p367 = scmp.ne.s32.totalorder %s352, %s366
      %p368 = scmp.eq.s32.totalorder %s41, 0
      %p369 = por %p367, %p368
      %s370 = ssub.s32 %s42, %s61
      %s371 = ssub.s32 %s43, %s57
      %s372 = sor.u32 %s370, %s371
      %p373 = scmp.eq.s32.totalorder %s372, 0
      %s375 = sadd.s32 %s374, 1
      %s376 = scalar_select %p373, %s374, %s375
      %p379 = pneg %p373
      %p380 = scmp.eq.s32.totalorder %s35, 7
      %p381 = por %p379, %p380
      %p382 = scmp.ne.s32.totalorder %s374, %s377
      %p383 = scmp.eq.s32.totalorder %s35, 0
      %p384 = por %p382, %p383
      %p385 = scmp.ne.s32.totalorder %s374, %s377
      %p386 = scmp.eq.s32.totalorder %s40, 7
      %p387 = por %p385, %p386
      %p388 = scmp.ne.s32.totalorder %s377, %s378
      %p389 = scmp.eq.s32.totalorder %s40, 0
      %p390 = por %p388, %p389
      %p391 = scmp.ne.s32.totalorder %s377, %s378
      %p392 = scmp.eq.s32.totalorder %s41, 7
      %p393 = por %p391, %p392
      %p395 = scmp.ne.s32.totalorder %s378, %s394
      %p396 = scmp.eq.s32.totalorder %s41, 0
      %p397 = por %p395, %p396
      %p398 = scmp.le.s32.totalorder 1, %s35
      %p399 = scmp.lt.s32.totalorder %s35, 9
      %p400 = pnand %p398, %p399
      %p401 = pneg %p400
      // Predicated region
      $region9: #{tpu_custom_call.1} parent=5 // pred_check
        _
      $region10: #{tpu_custom_call.1} parent=5 // pred_check_branch
        %403 = sbr.rel (%p400) target = $region12
      $region11: #{tpu_custom_call.1} parent=5 // pred_region
        %s404 = ssub.s32 %s35, 1
        // Predicated region
        $region13: #{tpu_custom_call.1} parent=11 // pred_check
          %p405 = pneg %p131
        $region14: #{tpu_custom_call.1} parent=11 // pred_check_branch
          %407 = sbr.rel (%p405) target = $region16
        $region15: #{tpu_custom_call.1} parent=11 // pred_region
          _
        $region16: #{tpu_custom_call.1} parent=11 // pred_fallthru
          _
        // Predicated region
        $region17: #{tpu_custom_call.1} parent=11 // pred_check
          %p408 = pneg %p152
        $region18: #{tpu_custom_call.1} parent=11 // pred_check_branch
          %410 = sbr.rel (%p408) target = $region20
        $region19: #{tpu_custom_call.1} parent=11 // pred_region
          %s412 = ssub.s32 256, 256
          %413 = vsyncadd [#allocation12], %s412
          %s414 = sshll.u32 [#allocation11], 4
          %s415 = int_to_ptr.vmem [resolvable:$true] %s414
          %420 = dma.hbm_to_vmem [thread:$0]  %s4, 256, %s415, [#allocation12], 64, 64, 4
        $region20: #{tpu_custom_call.1} parent=11 // pred_fallthru
          _
        // Predicated region
        $region21: #{tpu_custom_call.1} parent=11 // pred_check
          %p421 = pneg %p173
        $region22: #{tpu_custom_call.1} parent=11 // pred_check_branch
          %423 = sbr.rel (%p421) target = $region24
        $region23: #{tpu_custom_call.1} parent=11 // pred_region
          %s425 = ssub.s32 256, 256
          %426 = vsyncadd [#allocation12], %s425
          %s427 = sshll.u32 [#allocation13], 4
          %s428 = int_to_ptr.vmem [resolvable:$true] %s427
          %433 = dma.hbm_to_vmem [thread:$0]  %s5, 256, %s428, [#allocation12], 64, 64, 4
        $region24: #{tpu_custom_call.1} parent=11 // pred_fallthru
          _
        // Predicated region
        $region25: #{tpu_custom_call.1} parent=11 // pred_check
          %p434 = pneg %p194
        $region26: #{tpu_custom_call.1} parent=11 // pred_check_branch
          %436 = sbr.rel (%p434) target = $region28
        $region27: #{tpu_custom_call.1} parent=11 // pred_region
          %s438 = ssub.s32 256, 256
          %439 = vsyncadd [#allocation15], %s438
          %s440 = sshll.u32 [#allocation14], 4
          %s441 = int_to_ptr.vmem [resolvable:$true] %s440
          %446 = dma.hbm_to_vmem [thread:$0]  %s6, 256, %s441, [#allocation15], 64, 64, 4
        $region28: #{tpu_custom_call.1} parent=11 // pred_fallthru
          _
        // Predicated region
        $region29: #{tpu_custom_call.1} parent=11 // pred_check
          %p447 = pneg %p215
        $region30: #{tpu_custom_call.1} parent=11 // pred_check_branch
          %449 = sbr.rel (%p447) target = $region32
        $region31: #{tpu_custom_call.1} parent=11 // pred_region
          _
        $region32: #{tpu_custom_call.1} parent=11 // pred_fallthru
          _
        // Predicated region
        $region33: #{tpu_custom_call.1} parent=11 // pred_check
          %p450 = pneg %p236
        $region34: #{tpu_custom_call.1} parent=11 // pred_check_branch
          %452 = sbr.rel (%p450) target = $region36
        $region35: #{tpu_custom_call.1} parent=11 // pred_region
          _
        $region36: #{tpu_custom_call.1} parent=11 // pred_fallthru
          _
        // Predicated region
        $region37: #{tpu_custom_call.1} parent=11 // pred_check
          %p453 = pneg %p257
        $region38: #{tpu_custom_call.1} parent=11 // pred_check_branch
          %455 = sbr.rel (%p453) target = $region40
        $region39: #{tpu_custom_call.1} parent=11 // pred_region
          %s457 = ssub.s32 256, 256
          %458 = vsyncadd [#allocation15], %s457
          %s459 = sshll.u32 [#allocation16], 4
          %s460 = int_to_ptr.vmem [resolvable:$true] %s459
          %465 = dma.hbm_to_vmem [thread:$0]  %s9, 256, %s460, [#allocation15], 64, 64, 4
        $region40: #{tpu_custom_call.1} parent=11 // pred_fallthru
          _
        // Predicated region
        $region41: #{tpu_custom_call.1} parent=11 // pred_check
          %p466 = pneg %p278
        $region42: #{tpu_custom_call.1} parent=11 // pred_check_branch
          %468 = sbr.rel (%p466) target = $region44
        $region43: #{tpu_custom_call.1} parent=11 // pred_region
          _
        $region44: #{tpu_custom_call.1} parent=11 // pred_fallthru
          _
        // Predicated region
        $region45: #{tpu_custom_call.1} parent=11 // pred_check
          %p469 = pneg %p299
        $region46: #{tpu_custom_call.1} parent=11 // pred_check_branch
          %471 = sbr.rel (%p469) target = $region48
        $region47: #{tpu_custom_call.1} parent=11 // pred_region
          _
        $region48: #{tpu_custom_call.1} parent=11 // pred_fallthru
          _
        // Predicated region
        $region49: #{tpu_custom_call.1} parent=11 // pred_check
          %p472 = pneg %p320
        $region50: #{tpu_custom_call.1} parent=11 // pred_check_branch
          %474 = sbr.rel (%p472) target = $region52
        $region51: #{tpu_custom_call.1} parent=11 // pred_region
          _
        $region52: #{tpu_custom_call.1} parent=11 // pred_fallthru
          _
        // Predicated region
        $region53: #{tpu_custom_call.1} parent=11 // pred_check
          %p475 = pneg %p341
        $region54: #{tpu_custom_call.1} parent=11 // pred_check_branch
          %477 = sbr.rel (%p475) target = $region56
        $region55: #{tpu_custom_call.1} parent=11 // pred_region
          _
        $region56: #{tpu_custom_call.1} parent=11 // pred_fallthru
          _
        // Predicated region
        $region57: #{tpu_custom_call.1} parent=11 // pred_check
          %p478 = pneg %p362
        $region58: #{tpu_custom_call.1} parent=11 // pred_check_branch
          %480 = sbr.rel (%p478) target = $region60
        $region59: #{tpu_custom_call.1} parent=11 // pred_region
          _
        $region60: #{tpu_custom_call.1} parent=11 // pred_fallthru
          _
      $region12: #{tpu_custom_call.1} parent=5 // pred_fallthru
        _
      %p481 = scmp.lt.s32.totalorder %s35, 8
      // Predicated region
      $region61: #{tpu_custom_call.1} parent=5 // pred_check
        %p482 = pneg %p481
      $region62: #{tpu_custom_call.1} parent=5 // pred_check_branch
        %484 = sbr.rel (%p482) target = $region64
      $region63: #{tpu_custom_call.1} parent=5 // pred_region
        // Predicated region
        $region65: #{tpu_custom_call.1} parent=63 // pred_check
          %p485 = pneg %p76
        $region66: #{tpu_custom_call.1} parent=63 // pred_check_branch
          %487 = sbr.rel (%p485) target = $region68
        $region67: #{tpu_custom_call.1} parent=63 // pred_region
          %p488 = scmp.lt.s32.totalorder %s42, 1
          %s489 = scalar_select %p488, %s42, 1
          %p490 = scmp.lt.s32.totalorder %s43, 1
          %s491 = scalar_select %p490, %s43, 1
          %s492 = smul.addr %s489, 2
          %s493 = sadd.s32 %s491, %s492
          %s494 = smul.addr %s493, 8
          %s495 = scalar_lea.vmem %s1, %s494
        $region68: #{tpu_custom_call.1} parent=63 // pred_fallthru
          _
        // Predicated region
        $region69: #{tpu_custom_call.1} parent=63 // pred_check
          %p496 = pneg %p104
        $region70: #{tpu_custom_call.1} parent=63 // pred_check_branch
          %498 = sbr.rel (%p496) target = $region72
        $region71: #{tpu_custom_call.1} parent=63 // pred_region
          %s499 = sand.u32 %s94, 1
          %s500 = scalar_lea.sflag [#allocation9], %s499
          %s501 = sand.u32 %s94, 1
          %s502 = smul.addr %s501, 8
          %s503 = scalar_lea.vmem [#allocation8], %s502
          %s505 = ssub.s32 128, 128
          %506 = vsyncadd %s500, %s505
          %s507 = smul.addr %s42, 2
          %s508 = sadd.s32 %s44, %s507
          %s509 = smul.addr %s508, 128
          %s510 = scalar_lea.hbm %s2, %s509
          %s512 = sshll.u32 %s503, 4
          %s513 = int_to_ptr.vmem [resolvable:$true] %s512
          %515 = dma.hbm_to_vmem [thread:$0]  %s510, 128, %s513, %s500
        $region72: #{tpu_custom_call.1} parent=63 // pred_fallthru
          _
      $region64: #{tpu_custom_call.1} parent=5 // pred_fallthru
        _
      %p516 = scmp.le.s32.totalorder 1, %s35
      %p517 = scmp.lt.s32.totalorder %s35, 9
      %p518 = pnand %p516, %p517
      %p519 = pneg %p518
      // Predicated region
      $region73: #{tpu_custom_call.1} parent=5 // pred_check
        _
      $region74: #{tpu_custom_call.1} parent=5 // pred_check_branch
        %521 = sbr.rel (%p518) target = $region76
      $region75: #{tpu_custom_call.1} parent=5 // pred_region
        %s522 = ssub.s32 %s35, 1
        %s523 = sand.u32 %s97, 1
        %s524 = scalar_lea.sflag [#allocation9], %s523
        %s525 = sand.u32 %s97, 1
        %s526 = smul.addr %s525, 8
        %s527 = scalar_lea.vmem [#allocation8], %s526
        // Predicated region
        $region77: #{tpu_custom_call.1} parent=75 // pred_check
          %p528 = pneg %p110
        $region78: #{tpu_custom_call.1} parent=75 // pred_check_branch
          %530 = sbr.rel (%p528) target = $region80
        $region79: #{tpu_custom_call.1} parent=75 // pred_region
          %531 = dma.done %s524, 128
        $region80: #{tpu_custom_call.1} parent=75 // pred_fallthru
          _
        // Predicated region
        $region81: #{tpu_custom_call.1} parent=75 // pred_check
          %p532 = pneg %p152
        $region82: #{tpu_custom_call.1} parent=75 // pred_check_branch
          %534 = sbr.rel (%p532) target = $region84
        $region83: #{tpu_custom_call.1} parent=75 // pred_region
          %535 = dma.done [#allocation12], 256
        $region84: #{tpu_custom_call.1} parent=75 // pred_fallthru
          _
        // Predicated region
        $region85: #{tpu_custom_call.1} parent=75 // pred_check
          %p536 = pneg %p173
        $region86: #{tpu_custom_call.1} parent=75 // pred_check_branch
          %538 = sbr.rel (%p536) target = $region88
        $region87: #{tpu_custom_call.1} parent=75 // pred_region
          %539 = dma.done [#allocation12], 256
        $region88: #{tpu_custom_call.1} parent=75 // pred_fallthru
          _
        // Predicated region
        $region89: #{tpu_custom_call.1} parent=75 // pred_check
          %p540 = pneg %p194
        $region90: #{tpu_custom_call.1} parent=75 // pred_check_branch
          %542 = sbr.rel (%p540) target = $region92
        $region91: #{tpu_custom_call.1} parent=75 // pred_region
          %543 = dma.done [#allocation15], 256
        $region92: #{tpu_custom_call.1} parent=75 // pred_fallthru
          _
        // Predicated region
        $region93: #{tpu_custom_call.1} parent=75 // pred_check
          %p544 = pneg %p257
        $region94: #{tpu_custom_call.1} parent=75 // pred_check_branch
          %546 = sbr.rel (%p544) target = $region96
        $region95: #{tpu_custom_call.1} parent=75 // pred_region
          %547 = dma.done [#allocation15], 256
        $region96: #{tpu_custom_call.1} parent=75 // pred_fallthru
          _
        %p548 = scmp.lt.s32.totalorder %s45, 1
        %s549 = scalar_select %p548, %s45, 1
        %p550 = scmp.lt.s32.totalorder %s46, 1
        %s551 = scalar_select %p550, %s46, 1
        %s552 = smul.addr %s549, 2
        %s553 = sadd.s32 %s551, %s552
        %s554 = smul.addr %s553, 8
        %s555 = scalar_lea.vmem %s1, %s554
        %p556 = pneg %p82
        %p557 = pneg %p79
        %s558 = sand.u32 %s97, 1
        %s559 = scalar_lea.sflag [#allocation9], %s558
        %s560 = sand.u32 %s97, 1
        %s561 = smul.addr %s560, 8
        %s562 = scalar_lea.vmem [#allocation8], %s561
        %p563 = pneg %p110
        %p564 = pneg %p107
        %p565 = pneg %p131
        %p566 = pneg %p128
        %p567 = pneg %p152
        %p568 = pneg %p149
        %p569 = pneg %p173
        %p570 = pneg %p170
        %p571 = pneg %p194
        %p572 = pneg %p191
        %p573 = pneg %p215
        %p574 = pneg %p212
        %p575 = pneg %p236
        %p576 = pneg %p233
        %p577 = pneg %p257
        %p578 = pneg %p254
        %p579 = pneg %p278
        %p580 = pneg %p275
        %p581 = pneg %p299
        %p582 = pneg %p296
        %p583 = pneg %p320
        %p584 = pneg %p317
        %p585 = pneg %p341
        %p586 = pneg %p338
        %p587 = pneg %p362
        %p588 = pneg %p359
        %p589 = pneg %p390
        %p590 = pneg %p387
        %s591 = sand.u32 %s377, 1
        %s592 = scalar_lea.sflag [#allocation10], %s591
        %s593 = sand.u32 %s377, 1
        %s594 = smul.addr %s593, 8
        %s595 = scalar_lea.vmem [#allocation17], %s594
        %p596 = scmp.lt.s32.totalorder %s45, 1
        %s597 = scalar_select %p596, %s45, 1
        %p598 = scmp.lt.s32.totalorder %s46, 1
        %s599 = scalar_select %p598, %s46, 1
        %s600 = smul.addr %s597, 2
        %s601 = sadd.s32 %s599, %s600
        %s602 = smul.addr %s601, 8
        %s603 = scalar_lea.vmem %s1, %s602
        %s605 = sld [smem:[#allocation7 + %s45]]
        %p606 = scmp.eq.s32.totalorder %s47, 0
        // Predicated region
        $region97: #{tpu_custom_call.1} parent=75 // pred_check
          %p607 = pneg %p606
        $region98: #{tpu_custom_call.1} parent=75 // pred_check_branch
          %609 = sbr.rel (%p607) target = $region100
        $region99: #{tpu_custom_call.1} parent=75 // pred_region
          %v610 = vld [vmem:[%s603] sm:$0xff]
          %v611 = vpack.c.bf16 %v610, %v610
          %v612 = vld [vmem:[%s3] sm:$0xf]
          %v613 = vld [vmem:[%s3 + $0x4] sm:$0xf]
          %v614 = vld [vmem:[%s3 + $0x8] sm:$0xf]
          %v615 = vld [vmem:[%s3 + $0xc] sm:$0xf]
          %v620 = vunpack.c.l.b16 %v612
          %v621 = vunpack.c.l.b16 %v613
          %v622 = vunpack.c.l.b16 %v614
          %v623 = vunpack.c.l.b16 %v615
          %v624 = vpack.c.b16 %v621, %v620
          %v625 = vpack.c.b16 %v623, %v622
          %vm628 = vcmask 261120
          %v630 = vsel %vm628, %v611, 0
          %632 = vmatprep.subr.bf16.mxu0 0
          %633 = vmatpush1.bf16.msra.mxu0 0
          %634 = vmatprep.subr.bf16.mxu0 0
          %635 = vmatpush1.bf16.msra.mxu0 0
          %636 = vmatprep.subr.bf16.mxu0 0
          %637 = vmatpush1.bf16.msra.mxu0 0
          %638 = vmatprep.subr.bf16.mxu0 0
          %639 = vmatpush1.bf16.msra.mxu0 0
          %640 = vmatprep.subr.bf16.mxu0 0
          %641 = vmatpush1.bf16.msra.mxu0 0
          %642 = vmatprep.subr.bf16.mxu0 0
          %643 = vmatpush1.bf16.msra.mxu0 0
          %644 = vmatprep.subr.bf16.mxu0 0
          %645 = vmatpush1.bf16.msra.mxu0 %v625
          %646 = vmatprep.subr.bf16.mxu0 0
          %647 = vmatpush1.bf16.msra.mxu0 %v624
          %648 = vmatprep.subr.bf16.mxu0 0
          %649 = vmatpush2.bf16.msra.mxu0 0
          %650 = vmatprep.subr.bf16.mxu0 0
          %651 = vmatpush2.bf16.msra.mxu0 0
          %652 = vmatprep.subr.bf16.mxu0 0
          %653 = vmatpush2.bf16.msra.mxu0 0
          %654 = vmatprep.subr.bf16.mxu0 0
          %655 = vmatpush2.bf16.msra.mxu0 0
          %656 = vmatprep.subr.bf16.mxu0 0
          %657 = vmatpush2.bf16.msra.mxu0 0
          %658 = vmatprep.subr.bf16.mxu0 0
          %659 = vmatpush2.bf16.msra.mxu0 0
          %660 = vmatprep.subr.bf16.mxu0 0
          %661 = vmatpush2.bf16.msra.mxu0 0
          %662 = vmatprep.subr.bf16.mxu0 0
          %663 = vmatpush2.bf16.msra.mxu0 0
          %664 = vmatprep.mubr.bf16.mxu0 0
          %665 = vmatmul.mubr.bf16.gmra.mxu0 %v630
          %v666 = vpop.f32.mrf.mxu0
          %v667 = vadd.f32 0.0, %v666
          %v668 = vpop.f32.mrf.mxu0
          %v669 = vpop.f32.mrf.mxu0
          %v670 = vpop.f32.mrf.mxu0
          %671 = vdwg.mxu0
          %v672 = vpack.c.bf16 %v667, %v667
          %vm673 = vcmask 257024
          %674 = vst.msk [vmem:[#allocation2] sm:$0xf] %vm673, %v672
          %vm675 = vcmask 7168
          %676 = vst.msk [vmem:[#allocation3] sm:$0xff] %vm675, -inf
          %677 = vst.msk [vmem:[#allocation3 + $0x8] sm:$0xff] %vm675, -inf
          %678 = vst.msk [vmem:[#allocation3 + $0x10] sm:$0xff] %vm675, -inf
          %679 = vst.msk [vmem:[#allocation3 + $0x18] sm:$0xff] %vm675, -inf
          %680 = vst.msk [vmem:[#allocation4] sm:$0xff] %vm675, 0.0
          %681 = vst.msk [vmem:[#allocation4 + $0x8] sm:$0xff] %vm675, 0.0
          %682 = vst.msk [vmem:[#allocation4 + $0x10] sm:$0xff] %vm675, 0.0
          %683 = vst.msk [vmem:[#allocation4 + $0x18] sm:$0xff] %vm675, 0.0
          %684 = vst.msk [vmem:[#allocation5] sm:$0xff] %vm628, 0.0
        $region100: #{tpu_custom_call.1} parent=75 // pred_fallthru
          _
        %v685 = vld [vmem:[%s527] sm:$0xff]
        %v686 = vpack.c.bf16 %v685, %v685
        %v687 = vld [vmem:[#allocation11] sm:$0xf]
        %v688 = vld [vmem:[#allocation11 + $0x4] sm:$0xf]
        %v689 = vld [vmem:[#allocation11 + $0x8] sm:$0xf]
        %v690 = vld [vmem:[#allocation11 + $0xc] sm:$0xf]
        %v695 = vunpack.c.l.b16 %v687
        %v696 = vunpack.c.l.b16 %v688
        %v697 = vunpack.c.l.b16 %v689
        %v698 = vunpack.c.l.b16 %v690
        %v699 = vpack.c.b16 %v696, %v695
        %v700 = vpack.c.b16 %v698, %v697
        %vm703 = vcmask 261120
        %v705 = vsel %vm703, %v686, 0
        %707 = vmatprep.subr.bf16.mxu0 0
        %708 = vmatpush1.bf16.msra.mxu0 0
        %709 = vmatprep.subr.bf16.mxu0 0
        %710 = vmatpush1.bf16.msra.mxu0 0
        %711 = vmatprep.subr.bf16.mxu0 0
        %712 = vmatpush1.bf16.msra.mxu0 0
        %713 = vmatprep.subr.bf16.mxu0 0
        %714 = vmatpush1.bf16.msra.mxu0 0
        %715 = vmatprep.subr.bf16.mxu0 0
        %716 = vmatpush1.bf16.msra.mxu0 0
        %717 = vmatprep.subr.bf16.mxu0 0
        %718 = vmatpush1.bf16.msra.mxu0 0
        %719 = vmatprep.subr.bf16.mxu0 0
        %720 = vmatpush1.bf16.msra.mxu0 %v700
        %721 = vmatprep.subr.bf16.mxu0 0
        %722 = vmatpush1.bf16.msra.mxu0 %v699
        %723 = vmatprep.subr.bf16.mxu0 0
        %724 = vmatpush2.bf16.msra.mxu0 0
        %725 = vmatprep.subr.bf16.mxu0 0
        %726 = vmatpush2.bf16.msra.mxu0 0
        %727 = vmatprep.subr.bf16.mxu0 0
        %728 = vmatpush2.bf16.msra.mxu0 0
        %729 = vmatprep.subr.bf16.mxu0 0
        %730 = vmatpush2.bf16.msra.mxu0 0
        %731 = vmatprep.subr.bf16.mxu0 0
        %732 = vmatpush2.bf16.msra.mxu0 0
        %733 = vmatprep.subr.bf16.mxu0 0
        %734 = vmatpush2.bf16.msra.mxu0 0
        %735 = vmatprep.subr.bf16.mxu0 0
        %736 = vmatpush2.bf16.msra.mxu0 0
        %737 = vmatprep.subr.bf16.mxu0 0
        %738 = vmatpush2.bf16.msra.mxu0 0
        %739 = vmatprep.mubr.bf16.mxu0 0
        %740 = vmatmul.mubr.bf16.gmra.mxu0 %v705
        %v741 = vpop.f32.mrf.mxu0
        %v742 = vadd.f32 0.0, %v741
        %v743 = vpop.f32.mrf.mxu0
        %v744 = vpop.f32.mrf.mxu0
        %v745 = vpop.f32.mrf.mxu0
        %746 = vdwg.mxu0
        %v747 = vpack.c.bf16 %v742, %v742
        %v748 = vld [vmem:[#allocation13] sm:$0xf]
        %v749 = vld [vmem:[#allocation13 + $0x4] sm:$0xf]
        %v750 = vld [vmem:[#allocation13 + $0x8] sm:$0xf]
        %v751 = vld [vmem:[#allocation13 + $0xc] sm:$0xf]
        %v756 = vunpack.c.l.b16 %v748
        %v757 = vunpack.c.l.b16 %v749
        %v758 = vunpack.c.l.b16 %v750
        %v759 = vunpack.c.l.b16 %v751
        %v760 = vpack.c.b16 %v757, %v756
        %v761 = vpack.c.b16 %v759, %v758
        %764 = vmatprep.subr.bf16.mxu0 0
        %765 = vmatpush1.bf16.msra.mxu0 0
        %766 = vmatprep.subr.bf16.mxu0 0
        %767 = vmatpush1.bf16.msra.mxu0 0
        %768 = vmatprep.subr.bf16.mxu0 0
        %769 = vmatpush1.bf16.msra.mxu0 0
        %770 = vmatprep.subr.bf16.mxu0 0
        %771 = vmatpush1.bf16.msra.mxu0 0
        %772 = vmatprep.subr.bf16.mxu0 0
        %773 = vmatpush1.bf16.msra.mxu0 0
        %774 = vmatprep.subr.bf16.mxu0 0
        %775 = vmatpush1.bf16.msra.mxu0 0
        %776 = vmatprep.subr.bf16.mxu0 0
        %777 = vmatpush1.bf16.msra.mxu0 %v761
        %778 = vmatprep.subr.bf16.mxu0 0
        %779 = vmatpush1.bf16.msra.mxu0 %v760
        %780 = vmatprep.subr.bf16.mxu0 0
        %781 = vmatpush2.bf16.msra.mxu0 0
        %782 = vmatprep.subr.bf16.mxu0 0
        %783 = vmatpush2.bf16.msra.mxu0 0
        %784 = vmatprep.subr.bf16.mxu0 0
        %785 = vmatpush2.bf16.msra.mxu0 0
        %786 = vmatprep.subr.bf16.mxu0 0
        %787 = vmatpush2.bf16.msra.mxu0 0
        %788 = vmatprep.subr.bf16.mxu0 0
        %789 = vmatpush2.bf16.msra.mxu0 0
        %790 = vmatprep.subr.bf16.mxu0 0
        %791 = vmatpush2.bf16.msra.mxu0 0
        %792 = vmatprep.subr.bf16.mxu0 0
        %793 = vmatpush2.bf16.msra.mxu0 0
        %794 = vmatprep.subr.bf16.mxu0 0
        %795 = vmatpush2.bf16.msra.mxu0 0
        %796 = vmatprep.mubr.bf16.mxu0 0
        %797 = vmatmul.mubr.bf16.gmra.mxu0 %v705
        %v798 = vpop.f32.mrf.mxu0
        %v799 = vadd.f32 0.0, %v798
        %v800 = vpop.f32.mrf.mxu0
        %v801 = vpop.f32.mrf.mxu0
        %v802 = vpop.f32.mrf.mxu0
        %803 = vdwg.mxu0
        %v804 = vpack.c.bf16 %v799, %v799
        %s805 = smul.u32 %s47, 8
        %v806 = vlaneseq
        %v807 = vand.u32 %v806, 127
        %v808 = vstv %s805
        %v809 = vadd.s32 %v808, %v807
        %v810 = vstv %s605
        %vm811 = vcmp.lt.s32.totalorder %v809, %v810
        %v812 = vld [vmem:[#allocation2] sm:$0xf]
        %vm813 = vcmask 64512
        %v815 = vsel %vm813, %v812, 0
        %v818 = vsel %vm813, %v747, 0
        %820 = vmatprep.subr.bf16.mxu0 0
        %821 = vmatpush1.bf16.xpose.msra.mxu0 0
        %822 = vmatprep.subr.bf16.mxu0 0
        %823 = vmatpush1.bf16.xpose.msra.mxu0 0
        %824 = vmatprep.subr.bf16.mxu0 0
        %825 = vmatpush1.bf16.xpose.msra.mxu0 0
        %826 = vmatprep.subr.bf16.mxu0 0
        %827 = vmatpush1.bf16.xpose.msra.mxu0 0
        %828 = vmatprep.subr.bf16.mxu0 0
        %829 = vmatpush1.bf16.xpose.msra.mxu0 0
        %830 = vmatprep.subr.bf16.mxu0 0
        %831 = vmatpush1.bf16.xpose.msra.mxu0 0
        %832 = vmatprep.subr.bf16.mxu0 0
        %833 = vmatpush1.bf16.xpose.msra.mxu0 0
        %834 = vmatprep.subr.bf16.mxu0 0
        %835 = vmatpush1.bf16.xpose.msra.mxu0 %v818
        %836 = vmatprep.subr.bf16.mxu0 0
        %837 = vmatpush2.bf16.xpose.msra.mxu0 0
        %838 = vmatprep.subr.bf16.mxu0 0
        %839 = vmatpush2.bf16.xpose.msra.mxu0 0
        %840 = vmatprep.subr.bf16.mxu0 0
        %841 = vmatpush2.bf16.xpose.msra.mxu0 0
        %842 = vmatprep.subr.bf16.mxu0 0
        %843 = vmatpush2.bf16.xpose.msra.mxu0 0
        %844 = vmatprep.subr.bf16.mxu0 0
        %845 = vmatpush2.bf16.xpose.msra.mxu0 0
        %846 = vmatprep.subr.bf16.mxu0 0
        %847 = vmatpush2.bf16.xpose.msra.mxu0 0
        %848 = vmatprep.subr.bf16.mxu0 0
        %849 = vmatpush2.bf16.xpose.msra.mxu0 0
        %850 = vmatprep.subr.bf16.mxu0 0
        %851 = vmatpush2.bf16.xpose.msra.mxu0 0
        %852 = vmatprep.mubr.bf16.mxu0 0
        %853 = vmatmul.mubr.bf16.gmra.mxu0 %v815
        %v854 = vpop.f32.mrf.mxu0
        %v855 = vadd.f32 0.0, %v854
        %v856 = vpop.f32.mrf.mxu0
        %v857 = vpop.f32.mrf.mxu0
        %v858 = vpop.f32.mrf.mxu0
        %859 = vdwg.mxu0
        %v860 = vmul.f32 %v855, 0.35355338
        %v861 = vsel %vm811, %v860, -1000000.0
        %v862 = vld [vmem:[#allocation3] sm:$0xff]
        %v863 = vsel %vm813, %v861, -inf
        %864 = vmax.xlane.f32.xlu0 %v863
        %v865 = vpop.xlane.xlu0 %864
        %v866 = vmax.f32 %v862, %v865
        %v867 = vsub.f32 %v862, %v866
        %v868 = vmul.f32 %v867, 1.442695
        %v869 = vpow.pop %v868
        %871 = vset.pattern.permute.xlu0 0
        %872 = vperm.xlu0 %871, %v866
        %v873 = vpop.permute.xlu0 %872
        %v875 = vsub.f32 %v861, %v873
        %v876 = vmul.f32 %v875, 1.442695
        %v877 = vpow.pop %v876
        %v878 = vld [vmem:[#allocation4] sm:$0xff]
        %v879 = vmul.f32 %v869, %v878
        %v880 = vsel %vm813, %v877, 0.0
        %881 = vadd.xlane.f32.xlu0 %v880
        %v882 = vpop.xlane.xlu0 %881
        %v883 = vadd.f32 %v879, %v882
        %vm884 = vcmask 7168
        %885 = vst.msk [vmem:[#allocation4] sm:$0xff] %vm884, %v883
        %v886 = vpack.c.bf16 %v877, %v877
        %v888 = vsel %vm813, %v886, 0
        %vm890 = vcmask 1043456
        %v892 = vsel %vm890, %v804, 0
        %894 = vmatprep.subr.bf16.mxu0 0
        %895 = vmatpush1.bf16.msra.mxu0 0
        %896 = vmatprep.subr.bf16.mxu0 0
        %897 = vmatpush1.bf16.msra.mxu0 0
        %898 = vmatprep.subr.bf16.mxu0 0
        %899 = vmatpush1.bf16.msra.mxu0 0
        %900 = vmatprep.subr.bf16.mxu0 0
        %901 = vmatpush1.bf16.msra.mxu0 0
        %902 = vmatprep.subr.bf16.mxu0 0
        %903 = vmatpush1.bf16.msra.mxu0 0
        %904 = vmatprep.subr.bf16.mxu0 0
        %905 = vmatpush1.bf16.msra.mxu0 0
        %906 = vmatprep.subr.bf16.mxu0 0
        %907 = vmatpush1.bf16.msra.mxu0 0
        %908 = vmatprep.subr.bf16.mxu0 0
        %909 = vmatpush1.bf16.msra.mxu0 %v892
        %910 = vmatprep.subr.bf16.mxu0 0
        %911 = vmatpush2.bf16.msra.mxu0 0
        %912 = vmatprep.subr.bf16.mxu0 0
        %913 = vmatpush2.bf16.msra.mxu0 0
        %914 = vmatprep.subr.bf16.mxu0 0
        %915 = vmatpush2.bf16.msra.mxu0 0
        %916 = vmatprep.subr.bf16.mxu0 0
        %917 = vmatpush2.bf16.msra.mxu0 0
        %918 = vmatprep.subr.bf16.mxu0 0
        %919 = vmatpush2.bf16.msra.mxu0 0
        %920 = vmatprep.subr.bf16.mxu0 0
        %921 = vmatpush2.bf16.msra.mxu0 0
        %922 = vmatprep.subr.bf16.mxu0 0
        %923 = vmatpush2.bf16.msra.mxu0 0
        %924 = vmatprep.subr.bf16.mxu0 0
        %925 = vmatpush2.bf16.msra.mxu0 0
        %926 = vmatprep.mubr.bf16.mxu0 0
        %927 = vmatmul.mubr.bf16.gmra.mxu0 %v888
        %v928 = vpop.f32.mrf.mxu0
        %v929 = vadd.f32 0.0, %v928
        %v930 = vpop.f32.mrf.mxu0
        %v931 = vpop.f32.mrf.mxu0
        %v932 = vpop.f32.mrf.mxu0
        %933 = vdwg.mxu0
        %v934 = vld [vmem:[#allocation5] sm:$0xff]
        %936 = vset.pattern.permute.xlu0 0
        %937 = vperm.xlu0 %936, %v869
        %v938 = vpop.permute.xlu0 %937
        %v940 = vmul.f32 %v938, %v934
        %v941 = vadd.f32 %v940, %v929
        %942 = vst.msk [vmem:[#allocation5] sm:$0xff] %vm813, %v941
        %943 = vst.msk [vmem:[#allocation3] sm:$0xff] %vm884, %v866
        %v945 = vunpack.c.l.b16 %v812
        %v946 = vpack.c.b16 %v945, %v945
        %947 = vrot.lane.b32.xlu0 %v946, 120
        %v948 = vpop.permute.xlu0 %947
        %950 = vrot.lane.b32.xlu0 %v747, 120
        %v951 = vpop.permute.xlu0 %950
        %v953 = vsel %vm813, %v948, 0
        %v956 = vsel %vm813, %v951, 0
        %958 = vmatprep.subr.bf16.mxu0 0
        %959 = vmatpush1.bf16.xpose.msra.mxu0 0
        %960 = vmatprep.subr.bf16.mxu0 0
        %961 = vmatpush1.bf16.xpose.msra.mxu0 0
        %962 = vmatprep.subr.bf16.mxu0 0
        %963 = vmatpush1.bf16.xpose.msra.mxu0 0
        %964 = vmatprep.subr.bf16.mxu0 0
        %965 = vmatpush1.bf16.xpose.msra.mxu0 0
        %966 = vmatprep.subr.bf16.mxu0 0
        %967 = vmatpush1.bf16.xpose.msra.mxu0 0
        %968 = vmatprep.subr.bf16.mxu0 0
        %969 = vmatpush1.bf16.xpose.msra.mxu0 0
        %970 = vmatprep.subr.bf16.mxu0 0
        %971 = vmatpush1.bf16.xpose.msra.mxu0 0
        %972 = vmatprep.subr.bf16.mxu0 0
        %973 = vmatpush1.bf16.xpose.msra.mxu0 %v956
        %974 = vmatprep.subr.bf16.mxu0 0
        %975 = vmatpush2.bf16.xpose.msra.mxu0 0
        %976 = vmatprep.subr.bf16.mxu0 0
        %977 = vmatpush2.bf16.xpose.msra.mxu0 0
        %978 = vmatprep.subr.bf16.mxu0 0
        %979 = vmatpush2.bf16.xpose.msra.mxu0 0
        %980 = vmatprep.subr.bf16.mxu0 0
        %981 = vmatpush2.bf16.xpose.msra.mxu0 0
        %982 = vmatprep.subr.bf16.mxu0 0
        %983 = vmatpush2.bf16.xpose.msra.mxu0 0
        %984 = vmatprep.subr.bf16.mxu0 0
        %985 = vmatpush2.bf16.xpose.msra.mxu0 0
        %986 = vmatprep.subr.bf16.mxu0 0
        %987 = vmatpush2.bf16.xpose.msra.mxu0 0
        %988 = vmatprep.subr.bf16.mxu0 0
        %989 = vmatpush2.bf16.xpose.msra.mxu0 0
        %990 = vmatprep.mubr.bf16.mxu0 0
        %991 = vmatmul.mubr.bf16.gmra.mxu0 %v953
        %v992 = vpop.f32.mrf.mxu0
        %v993 = vadd.f32 0.0, %v992
        %v994 = vpop.f32.mrf.mxu0
        %v995 = vpop.f32.mrf.mxu0
        %v996 = vpop.f32.mrf.mxu0
        %997 = vdwg.mxu0
        %v998 = vmul.f32 %v993, 0.35355338
        %v999 = vsel %vm811, %v998, -1000000.0
        %s1000 = scalar_lea.vmem [#allocation3], 8
        %v1001 = vld [vmem:[%s1000] sm:$0xff]
        %v1002 = vsel %vm813, %v999, -inf
        %1003 = vmax.xlane.f32.xlu0 %v1002
        %v1004 = vpop.xlane.xlu0 %1003
        %v1005 = vmax.f32 %v1001, %v1004
        %v1006 = vsub.f32 %v1001, %v1005
        %v1007 = vmul.f32 %v1006, 1.442695
        %v1008 = vpow.pop %v1007
        %1010 = vset.pattern.permute.xlu0 0
        %1011 = vperm.xlu0 %1010, %v1005
        %v1012 = vpop.permute.xlu0 %1011
        %v1014 = vsub.f32 %v999, %v1012
        %v1015 = vmul.f32 %v1014, 1.442695
        %v1016 = vpow.pop %v1015
        %s1017 = scalar_lea.vmem [#allocation4], 8
        %v1018 = vld [vmem:[%s1017] sm:$0xff]
        %v1019 = vmul.f32 %v1008, %v1018
        %v1020 = vsel %vm813, %v1016, 0.0
        %1021 = vadd.xlane.f32.xlu0 %v1020
        %v1022 = vpop.xlane.xlu0 %1021
        %v1023 = vadd.f32 %v1019, %v1022
        %1024 = vst.msk [vmem:[%s1017] sm:$0xff] %vm884, %v1023
        %v1025 = vpack.c.bf16 %v1016, %v1016
        %1027 = vrot.lane.b32.xlu0 %v804, 120
        %v1028 = vpop.permute.xlu0 %1027
        %v1030 = vsel %vm813, %v1025, 0
        %v1033 = vsel %vm890, %v1028, 0
        %1035 = vmatprep.subr.bf16.mxu0 0
        %1036 = vmatpush1.bf16.msra.mxu0 0
        %1037 = vmatprep.subr.bf16.mxu0 0
        %1038 = vmatpush1.bf16.msra.mxu0 0
        %1039 = vmatprep.subr.bf16.mxu0 0
        %1040 = vmatpush1.bf16.msra.mxu0 0
        %1041 = vmatprep.subr.bf16.mxu0 0
        %1042 = vmatpush1.bf16.msra.mxu0 0
        %1043 = vmatprep.subr.bf16.mxu0 0
        %1044 = vmatpush1.bf16.msra.mxu0 0
        %1045 = vmatprep.subr.bf16.mxu0 0
        %1046 = vmatpush1.bf16.msra.mxu0 0
        %1047 = vmatprep.subr.bf16.mxu0 0
        %1048 = vmatpush1.bf16.msra.mxu0 0
        %1049 = vmatprep.subr.bf16.mxu0 0
        %1050 = vmatpush1.bf16.msra.mxu0 %v1033
        %1051 = vmatprep.subr.bf16.mxu0 0
        %1052 = vmatpush2.bf16.msra.mxu0 0
        %1053 = vmatprep.subr.bf16.mxu0 0
        %1054 = vmatpush2.bf16.msra.mxu0 0
        %1055 = vmatprep.subr.bf16.mxu0 0
        %1056 = vmatpush2.bf16.msra.mxu0 0
        %1057 = vmatprep.subr.bf16.mxu0 0
        %1058 = vmatpush2.bf16.msra.mxu0 0
        %1059 = vmatprep.subr.bf16.mxu0 0
        %1060 = vmatpush2.bf16.msra.mxu0 0
        %1061 = vmatprep.subr.bf16.mxu0 0
        %1062 = vmatpush2.bf16.msra.mxu0 0
        %1063 = vmatprep.subr.bf16.mxu0 0
        %1064 = vmatpush2.bf16.msra.mxu0 0
        %1065 = vmatprep.subr.bf16.mxu0 0
        %1066 = vmatpush2.bf16.msra.mxu0 0
        %1067 = vmatprep.mubr.bf16.mxu0 0
        %1068 = vmatmul.mubr.bf16.gmra.mxu0 %v1030
        %v1069 = vpop.f32.mrf.mxu0
        %v1070 = vadd.f32 0.0, %v1069
        %v1071 = vpop.f32.mrf.mxu0
        %v1072 = vpop.f32.mrf.mxu0
        %v1073 = vpop.f32.mrf.mxu0
        %1074 = vdwg.mxu0
        %v1075 = vld [vmem:[#allocation5] sm:$0xff]
        %1077 = vset.pattern.permute.xlu0 0
        %1078 = vperm.xlu0 %1077, %v1008
        %v1079 = vpop.permute.xlu0 %1078
        %v1081 = vmul.f32 %v1079, %v1075
        %1083 = vrot.lane.b32.xlu0 %v1070, 8
        %v1084 = vpop.permute.xlu0 %1083
        %v1086 = vadd.f32 %v1081, %v1084
        %vm1087 = vcmask 130112
        %1088 = vst.msk [vmem:[#allocation5] sm:$0xff] %vm1087, %v1086
        %1089 = vst.msk [vmem:[%s1000] sm:$0xff] %vm884, %v1005
        %1090 = vrot.lane.b32.xlu0 %v946, 112
        %v1091 = vpop.permute.xlu0 %1090
        %1092 = vrot.lane.b32.xlu0 %v747, 112
        %v1093 = vpop.permute.xlu0 %1092
        %v1095 = vsel %vm813, %v1091, 0
        %v1098 = vsel %vm813, %v1093, 0
        %1100 = vmatprep.subr.bf16.mxu0 0
        %1101 = vmatpush1.bf16.xpose.msra.mxu0 0
        %1102 = vmatprep.subr.bf16.mxu0 0
        %1103 = vmatpush1.bf16.xpose.msra.mxu0 0
        %1104 = vmatprep.subr.bf16.mxu0 0
        %1105 = vmatpush1.bf16.xpose.msra.mxu0 0
        %1106 = vmatprep.subr.bf16.mxu0 0
        %1107 = vmatpush1.bf16.xpose.msra.mxu0 0
        %1108 = vmatprep.subr.bf16.mxu0 0
        %1109 = vmatpush1.bf16.xpose.msra.mxu0 0
        %1110 = vmatprep.subr.bf16.mxu0 0
        %1111 = vmatpush1.bf16.xpose.msra.mxu0 0
        %1112 = vmatprep.subr.bf16.mxu0 0
        %1113 = vmatpush1.bf16.xpose.msra.mxu0 0
        %1114 = vmatprep.subr.bf16.mxu0 0
        %1115 = vmatpush1.bf16.xpose.msra.mxu0 %v1098
        %1116 = vmatprep.subr.bf16.mxu0 0
        %1117 = vmatpush2.bf16.xpose.msra.mxu0 0
        %1118 = vmatprep.subr.bf16.mxu0 0
        %1119 = vmatpush2.bf16.xpose.msra.mxu0 0
        %1120 = vmatprep.subr.bf16.mxu0 0
        %1121 = vmatpush2.bf16.xpose.msra.mxu0 0
        %1122 = vmatprep.subr.bf16.mxu0 0
        %1123 = vmatpush2.bf16.xpose.msra.mxu0 0
        %1124 = vmatprep.subr.bf16.mxu0 0
        %1125 = vmatpush2.bf16.xpose.msra.mxu0 0
        %1126 = vmatprep.subr.bf16.mxu0 0
        %1127 = vmatpush2.bf16.xpose.msra.mxu0 0
        %1128 = vmatprep.subr.bf16.mxu0 0
        %1129 = vmatpush2.bf16.xpose.msra.mxu0 0
        %1130 = vmatprep.subr.bf16.mxu0 0
        %1131 = vmatpush2.bf16.xpose.msra.mxu0 0
        %1132 = vmatprep.mubr.bf16.mxu0 0
        %1133 = vmatmul.mubr.bf16.gmra.mxu0 %v1095
        %v1134 = vpop.f32.mrf.mxu0
        %v1135 = vadd.f32 0.0, %v1134
        %v1136 = vpop.f32.mrf.mxu0
        %v1137 = vpop.f32.mrf.mxu0
        %v1138 = vpop.f32.mrf.mxu0
        %1139 = vdwg.mxu0
        %v1140 = vmul.f32 %v1135, 0.35355338
        %v1141 = vsel %vm811, %v1140, -1000000.0
        %s1142 = scalar_lea.vmem [#allocation3], 16
        %v1143 = vld [vmem:[%s1142] sm:$0xff]
        %v1144 = vsel %vm813, %v1141, -inf
        %1145 = vmax.xlane.f32.xlu0 %v1144
        %v1146 = vpop.xlane.xlu0 %1145
        %v1147 = vmax.f32 %v1143, %v1146
        %v1148 = vsub.f32 %v1143, %v1147
        %v1149 = vmul.f32 %v1148, 1.442695
        %v1150 = vpow.pop %v1149
        %1152 = vset.pattern.permute.xlu0 0
        %1153 = vperm.xlu0 %1152, %v1147
        %v1154 = vpop.permute.xlu0 %1153
        %v1156 = vsub.f32 %v1141, %v1154
        %v1157 = vmul.f32 %v1156, 1.442695
        %v1158 = vpow.pop %v1157
        %s1159 = scalar_lea.vmem [#allocation4], 16
        %v1160 = vld [vmem:[%s1159] sm:$0xff]
        %v1161 = vmul.f32 %v1150, %v1160
        %v1162 = vsel %vm813, %v1158, 0.0
        %1163 = vadd.xlane.f32.xlu0 %v1162
        %v1164 = vpop.xlane.xlu0 %1163
        %v1165 = vadd.f32 %v1161, %v1164
        %1166 = vst.msk [vmem:[%s1159] sm:$0xff] %vm884, %v1165
        %v1167 = vpack.c.bf16 %v1158, %v1158
        %1168 = vrot.lane.b32.xlu0 %v804, 112
        %v1169 = vpop.permute.xlu0 %1168
        %v1171 = vsel %vm813, %v1167, 0
        %v1174 = vsel %vm890, %v1169, 0
        %1176 = vmatprep.subr.bf16.mxu0 0
        %1177 = vmatpush1.bf16.msra.mxu0 0
        %1178 = vmatprep.subr.bf16.mxu0 0
        %1179 = vmatpush1.bf16.msra.mxu0 0
        %1180 = vmatprep.subr.bf16.mxu0 0
        %1181 = vmatpush1.bf16.msra.mxu0 0
        %1182 = vmatprep.subr.bf16.mxu0 0
        %1183 = vmatpush1.bf16.msra.mxu0 0
        %1184 = vmatprep.subr.bf16.mxu0 0
        %1185 = vmatpush1.bf16.msra.mxu0 0
        %1186 = vmatprep.subr.bf16.mxu0 0
        %1187 = vmatpush1.bf16.msra.mxu0 0
        %1188 = vmatprep.subr.bf16.mxu0 0
        %1189 = vmatpush1.bf16.msra.mxu0 0
        %1190 = vmatprep.subr.bf16.mxu0 0
        %1191 = vmatpush1.bf16.msra.mxu0 %v1174
        %1192 = vmatprep.subr.bf16.mxu0 0
        %1193 = vmatpush2.bf16.msra.mxu0 0
        %1194 = vmatprep.subr.bf16.mxu0 0
        %1195 = vmatpush2.bf16.msra.mxu0 0
        %1196 = vmatprep.subr.bf16.mxu0 0
        %1197 = vmatpush2.bf16.msra.mxu0 0
        %1198 = vmatprep.subr.bf16.mxu0 0
        %1199 = vmatpush2.bf16.msra.mxu0 0
        %1200 = vmatprep.subr.bf16.mxu0 0
        %1201 = vmatpush2.bf16.msra.mxu0 0
        %1202 = vmatprep.subr.bf16.mxu0 0
        %1203 = vmatpush2.bf16.msra.mxu0 0
        %1204 = vmatprep.subr.bf16.mxu0 0
        %1205 = vmatpush2.bf16.msra.mxu0 0
        %1206 = vmatprep.subr.bf16.mxu0 0
        %1207 = vmatpush2.bf16.msra.mxu0 0
        %1208 = vmatprep.mubr.bf16.mxu0 0
        %1209 = vmatmul.mubr.bf16.gmra.mxu0 %v1171
        %v1210 = vpop.f32.mrf.mxu0
        %v1211 = vadd.f32 0.0, %v1210
        %v1212 = vpop.f32.mrf.mxu0
        %v1213 = vpop.f32.mrf.mxu0
        %v1214 = vpop.f32.mrf.mxu0
        %1215 = vdwg.mxu0
        %v1216 = vld [vmem:[#allocation5] sm:$0xff]
        %1218 = vset.pattern.permute.xlu0 0
        %1219 = vperm.xlu0 %1218, %v1150
        %v1220 = vpop.permute.xlu0 %1219
        %v1222 = vmul.f32 %v1220, %v1216
        %1224 = vrot.lane.b32.xlu0 %v1211, 16
        %v1225 = vpop.permute.xlu0 %1224
        %v1227 = vadd.f32 %v1222, %v1225
        %vm1228 = vcmask 195712
        %1229 = vst.msk [vmem:[#allocation5] sm:$0xff] %vm1228, %v1227
        %1230 = vst.msk [vmem:[%s1142] sm:$0xff] %vm884, %v1147
        %1231 = vrot.lane.b32.xlu0 %v946, 104
        %v1232 = vpop.permute.xlu0 %1231
        %1233 = vrot.lane.b32.xlu0 %v747, 104
        %v1234 = vpop.permute.xlu0 %1233
        %v1236 = vsel %vm813, %v1232, 0
        %v1239 = vsel %vm813, %v1234, 0
        %1241 = vmatprep.subr.bf16.mxu0 0
        %1242 = vmatpush1.bf16.xpose.msra.mxu0 0
        %1243 = vmatprep.subr.bf16.mxu0 0
        %1244 = vmatpush1.bf16.xpose.msra.mxu0 0
        %1245 = vmatprep.subr.bf16.mxu0 0
        %1246 = vmatpush1.bf16.xpose.msra.mxu0 0
        %1247 = vmatprep.subr.bf16.mxu0 0
        %1248 = vmatpush1.bf16.xpose.msra.mxu0 0
        %1249 = vmatprep.subr.bf16.mxu0 0
        %1250 = vmatpush1.bf16.xpose.msra.mxu0 0
        %1251 = vmatprep.subr.bf16.mxu0 0
        %1252 = vmatpush1.bf16.xpose.msra.mxu0 0
        %1253 = vmatprep.subr.bf16.mxu0 0
        %1254 = vmatpush1.bf16.xpose.msra.mxu0 0
        %1255 = vmatprep.subr.bf16.mxu0 0
        %1256 = vmatpush1.bf16.xpose.msra.mxu0 %v1239
        %1257 = vmatprep.subr.bf16.mxu0 0
        %1258 = vmatpush2.bf16.xpose.msra.mxu0 0
        %1259 = vmatprep.subr.bf16.mxu0 0
        %1260 = vmatpush2.bf16.xpose.msra.mxu0 0
        %1261 = vmatprep.subr.bf16.mxu0 0
        %1262 = vmatpush2.bf16.xpose.msra.mxu0 0
        %1263 = vmatprep.subr.bf16.mxu0 0
        %1264 = vmatpush2.bf16.xpose.msra.mxu0 0
        %1265 = vmatprep.subr.bf16.mxu0 0
        %1266 = vmatpush2.bf16.xpose.msra.mxu0 0
        %1267 = vmatprep.subr.bf16.mxu0 0
        %1268 = vmatpush2.bf16.xpose.msra.mxu0 0
        %1269 = vmatprep.subr.bf16.mxu0 0
        %1270 = vmatpush2.bf16.xpose.msra.mxu0 0
        %1271 = vmatprep.subr.bf16.mxu0 0
        %1272 = vmatpush2.bf16.xpose.msra.mxu0 0
        %1273 = vmatprep.mubr.bf16.mxu0 0
        %1274 = vmatmul.mubr.bf16.gmra.mxu0 %v1236
        %v1275 = vpop.f32.mrf.mxu0
        %v1276 = vadd.f32 0.0, %v1275
        %v1277 = vpop.f32.mrf.mxu0
        %v1278 = vpop.f32.mrf.mxu0
        %v1279 = vpop.f32.mrf.mxu0
        %1280 = vdwg.mxu0
        %v1281 = vmul.f32 %v1276, 0.35355338
        %v1282 = vsel %vm811, %v1281, -1000000.0
        %s1283 = scalar_lea.vmem [#allocation3], 24
        %v1284 = vld [vmem:[%s1283] sm:$0xff]
        %v1285 = vsel %vm813, %v1282, -inf
        %1286 = vmax.xlane.f32.xlu0 %v1285
        %v1287 = vpop.xlane.xlu0 %1286
        %v1288 = vmax.f32 %v1284, %v1287
        %v1289 = vsub.f32 %v1284, %v1288
        %v1290 = vmul.f32 %v1289, 1.442695
        %v1291 = vpow.pop %v1290
        %1293 = vset.pattern.permute.xlu0 0
        %1294 = vperm.xlu0 %1293, %v1288
        %v1295 = vpop.permute.xlu0 %1294
        %v1297 = vsub.f32 %v1282, %v1295
        %v1298 = vmul.f32 %v1297, 1.442695
        %v1299 = vpow.pop %v1298
        %s1300 = scalar_lea.vmem [#allocation4], 24
        %v1301 = vld [vmem:[%s1300] sm:$0xff]
        %v1302 = vmul.f32 %v1291, %v1301
        %v1303 = vsel %vm813, %v1299, 0.0
        %1304 = vadd.xlane.f32.xlu0 %v1303
        %v1305 = vpop.xlane.xlu0 %1304
        %v1306 = vadd.f32 %v1302, %v1305
        %1307 = vst.msk [vmem:[%s1300] sm:$0xff] %vm884, %v1306
        %v1308 = vpack.c.bf16 %v1299, %v1299
        %1309 = vrot.lane.b32.xlu0 %v804, 104
        %v1310 = vpop.permute.xlu0 %1309
        %v1312 = vsel %vm813, %v1308, 0
        %v1315 = vsel %vm890, %v1310, 0
        %1317 = vmatprep.subr.bf16.mxu0 0
        %1318 = vmatpush1.bf16.msra.mxu0 0
        %1319 = vmatprep.subr.bf16.mxu0 0
        %1320 = vmatpush1.bf16.msra.mxu0 0
        %1321 = vmatprep.subr.bf16.mxu0 0
        %1322 = vmatpush1.bf16.msra.mxu0 0
        %1323 = vmatprep.subr.bf16.mxu0 0
        %1324 = vmatpush1.bf16.msra.mxu0 0
        %1325 = vmatprep.subr.bf16.mxu0 0
        %1326 = vmatpush1.bf16.msra.mxu0 0
        %1327 = vmatprep.subr.bf16.mxu0 0
        %1328 = vmatpush1.bf16.msra.mxu0 0
        %1329 = vmatprep.subr.bf16.mxu0 0
        %1330 = vmatpush1.bf16.msra.mxu0 0
        %1331 = vmatprep.subr.bf16.mxu0 0
        %1332 = vmatpush1.bf16.msra.mxu0 %v1315
        %1333 = vmatprep.subr.bf16.mxu0 0
        %1334 = vmatpush2.bf16.msra.mxu0 0
        %1335 = vmatprep.subr.bf16.mxu0 0
        %1336 = vmatpush2.bf16.msra.mxu0 0
        %1337 = vmatprep.subr.bf16.mxu0 0
        %1338 = vmatpush2.bf16.msra.mxu0 0
        %1339 = vmatprep.subr.bf16.mxu0 0
        %1340 = vmatpush2.bf16.msra.mxu0 0
        %1341 = vmatprep.subr.bf16.mxu0 0
        %1342 = vmatpush2.bf16.msra.mxu0 0
        %1343 = vmatprep.subr.bf16.mxu0 0
        %1344 = vmatpush2.bf16.msra.mxu0 0
        %1345 = vmatprep.subr.bf16.mxu0 0
        %1346 = vmatpush2.bf16.msra.mxu0 0
        %1347 = vmatprep.subr.bf16.mxu0 0
        %1348 = vmatpush2.bf16.msra.mxu0 0
        %1349 = vmatprep.mubr.bf16.mxu0 0
        %1350 = vmatmul.mubr.bf16.gmra.mxu0 %v1312
        %v1351 = vpop.f32.mrf.mxu0
        %v1352 = vadd.f32 0.0, %v1351
        %v1353 = vpop.f32.mrf.mxu0
        %v1354 = vpop.f32.mrf.mxu0
        %v1355 = vpop.f32.mrf.mxu0
        %1356 = vdwg.mxu0
        %v1357 = vld [vmem:[#allocation5] sm:$0xff]
        %1359 = vset.pattern.permute.xlu0 0
        %1360 = vperm.xlu0 %1359, %v1291
        %v1361 = vpop.permute.xlu0 %1360
        %v1363 = vmul.f32 %v1361, %v1357
        %1365 = vrot.lane.b32.xlu0 %v1352, 24
        %v1366 = vpop.permute.xlu0 %1365
        %v1368 = vadd.f32 %v1363, %v1366
        %vm1369 = vcmask 261312
        %1370 = vst.msk [vmem:[#allocation5] sm:$0xff] %vm1369, %v1368
        %1371 = vst.msk [vmem:[%s1283] sm:$0xff] %vm884, %v1288
        %p1372 = scmp.eq.s32.totalorder %s47, 1
        // Predicated region
        $region101: #{tpu_custom_call.1} parent=75 // pred_check
          %p1373 = pneg %p1372
        $region102: #{tpu_custom_call.1} parent=75 // pred_check_branch
          %1375 = sbr.rel (%p1373) target = $region104
        $region103: #{tpu_custom_call.1} parent=75 // pred_region
          %v1376 = vld [vmem:[#allocation5] sm:$0xff]
          %v1377 = vld [vmem:[#allocation4] sm:$0xff]
          %v1378 = vrcp.pop %v1377
          %1380 = vset.pattern.permute.xlu0 0
          %1381 = vperm.xlu0 %1380, %v1378
          %v1382 = vpop.permute.xlu0 %1381
          %v1384 = vmul.f32 %v1376, %v1382
          %1385 = vst.msk [vmem:[#allocation5] sm:$0xff] %vm813, %v1384
          %v1386 = vld [vmem:[#allocation5] sm:$0xff]
          %v1387 = vld [vmem:[%s1017] sm:$0xff]
          %v1388 = vrcp.pop %v1387
          %1390 = vset.pattern.permute.xlu0 0
          %1391 = vperm.xlu0 %1390, %v1388
          %v1392 = vpop.permute.xlu0 %1391
          %v1394 = vmul.f32 %v1386, %v1392
          %1395 = vst.msk [vmem:[#allocation5] sm:$0xff] %vm1087, %v1394
          %v1396 = vld [vmem:[#allocation5] sm:$0xff]
          %v1397 = vld [vmem:[%s1159] sm:$0xff]
          %v1398 = vrcp.pop %v1397
          %1400 = vset.pattern.permute.xlu0 0
          %1401 = vperm.xlu0 %1400, %v1398
          %v1402 = vpop.permute.xlu0 %1401
          %v1404 = vmul.f32 %v1396, %v1402
          %1405 = vst.msk [vmem:[#allocation5] sm:$0xff] %vm1228, %v1404
          %v1406 = vld [vmem:[#allocation5] sm:$0xff]
          %v1407 = vld [vmem:[%s1300] sm:$0xff]
          %v1408 = vrcp.pop %v1407
          %1410 = vset.pattern.permute.xlu0 0
          %1411 = vperm.xlu0 %1410, %v1408
          %v1412 = vpop.permute.xlu0 %1411
          %v1414 = vmul.f32 %v1406, %v1412
          %1415 = vst.msk [vmem:[#allocation5] sm:$0xff] %vm1369, %v1414
          %v1416 = vld [vmem:[%s603] sm:$0xff]
          %v1417 = vld [vmem:[#allocation5] sm:$0xff]
          %v1418 = vpack.c.bf16 %v1417, %v1417
          %v1419 = vld [vmem:[#allocation14] sm:$0xf]
          %v1420 = vld [vmem:[#allocation14 + $0x4] sm:$0xf]
          %v1421 = vld [vmem:[#allocation14 + $0x8] sm:$0xf]
          %v1422 = vld [vmem:[#allocation14 + $0xc] sm:$0xf]
          %v1427 = vunpack.c.l.b16 %v1419
          %v1428 = vunpack.c.l.b16 %v1420
          %v1429 = vunpack.c.l.b16 %v1421
          %v1430 = vunpack.c.l.b16 %v1422
          %v1431 = vpack.c.b16 %v1428, %v1427
          %v1432 = vpack.c.b16 %v1430, %v1429
          %v1436 = vsel %vm703, %v1418, 0
          %1438 = vmatprep.subr.bf16.mxu0 0
          %1439 = vmatpush1.bf16.msra.mxu0 0
          %1440 = vmatprep.subr.bf16.mxu0 0
          %1441 = vmatpush1.bf16.msra.mxu0 0
          %1442 = vmatprep.subr.bf16.mxu0 0
          %1443 = vmatpush1.bf16.msra.mxu0 0
          %1444 = vmatprep.subr.bf16.mxu0 0
          %1445 = vmatpush1.bf16.msra.mxu0 0
          %1446 = vmatprep.subr.bf16.mxu0 0
          %1447 = vmatpush1.bf16.msra.mxu0 0
          %1448 = vmatprep.subr.bf16.mxu0 0
          %1449 = vmatpush1.bf16.msra.mxu0 0
          %1450 = vmatprep.subr.bf16.mxu0 0
          %1451 = vmatpush1.bf16.msra.mxu0 %v1432
          %1452 = vmatprep.subr.bf16.mxu0 0
          %1453 = vmatpush1.bf16.msra.mxu0 %v1431
          %1454 = vmatprep.subr.bf16.mxu0 0
          %1455 = vmatpush2.bf16.msra.mxu0 0
          %1456 = vmatprep.subr.bf16.mxu0 0
          %1457 = vmatpush2.bf16.msra.mxu0 0
          %1458 = vmatprep.subr.bf16.mxu0 0
          %1459 = vmatpush2.bf16.msra.mxu0 0
          %1460 = vmatprep.subr.bf16.mxu0 0
          %1461 = vmatpush2.bf16.msra.mxu0 0
          %1462 = vmatprep.subr.bf16.mxu0 0
          %1463 = vmatpush2.bf16.msra.mxu0 0
          %1464 = vmatprep.subr.bf16.mxu0 0
          %1465 = vmatpush2.bf16.msra.mxu0 0
          %1466 = vmatprep.subr.bf16.mxu0 0
          %1467 = vmatpush2.bf16.msra.mxu0 0
          %1468 = vmatprep.subr.bf16.mxu0 0
          %1469 = vmatpush2.bf16.msra.mxu0 0
          %1470 = vmatprep.mubr.bf16.mxu0 0
          %1471 = vmatmul.mubr.bf16.gmra.mxu0 %v1436
          %v1472 = vpop.f32.mrf.mxu0
          %v1473 = vadd.f32 0.0, %v1472
          %v1474 = vpop.f32.mrf.mxu0
          %v1475 = vpop.f32.mrf.mxu0
          %v1476 = vpop.f32.mrf.mxu0
          %1477 = vdwg.mxu0
          %v1478 = vadd.f32 %v1416, %v1473
          %v1479 = vld [vmem:[%s7] sm:$0x1]
          %v1480 = vld [vmem:[%s8] sm:$0x1]
          %v1481 = vsel %vm703, %v1478, 0.0
          %1482 = vadd.xlane.f32.xlu0 %v1481
          %v1483 = vpop.xlane.xlu0 %1482
          %v1484 = vrcp.pop 32.0
          %v1485 = vmul.f32 %v1483, %v1484
          %v1486 = vsub.f32 %v1478, %v1485
          %v1487 = vmul.f32 %v1486, %v1486
          %v1488 = vsel %vm703, %v1487, 0.0
          %1489 = vadd.xlane.f32.xlu0 %v1488
          %v1490 = vpop.xlane.xlu0 %1489
          %v1491 = vmul.f32 %v1490, %v1484
          %v1492 = vadd.f32 %v1491, 1e-05
          %v1493 = vrsqrt.pop %v1492
          %v1494 = vmul.f32 %v1486, %v1493
          %v1496 = vlaneseq
          %v1497 = vshrl.u32 %v1496, 7
          %v1498 = vsub.s32 0, %v1497
          %v1499 = vrot.slane %v1479, %v1498
          %v1501 = vmul.f32 %v1494, %v1499
          %v1503 = vlaneseq
          %v1504 = vshrl.u32 %v1503, 7
          %v1505 = vsub.s32 0, %v1504
          %v1506 = vrot.slane %v1480, %v1505
          %v1508 = vadd.f32 %v1501, %v1506
          %v1509 = vpack.c.bf16 %v1508, %v1508
          %v1510 = vld [vmem:[#allocation16] sm:$0xf]
          %v1511 = vld [vmem:[#allocation16 + $0x4] sm:$0xf]
          %v1512 = vld [vmem:[#allocation16 + $0x8] sm:$0xf]
          %v1513 = vld [vmem:[#allocation16 + $0xc] sm:$0xf]
          %v1514 = vld [vmem:[%s10] sm:$0x1]
          %v1516 = vlaneseq
          %v1517 = vshrl.u32 %v1516, 7
          %v1518 = vsub.s32 0, %v1517
          %v1519 = vrot.slane %v1514, %v1518
          %v1525 = vunpack.c.l.b16 %v1510
          %v1526 = vunpack.c.l.b16 %v1511
          %v1527 = vunpack.c.l.b16 %v1512
          %v1528 = vunpack.c.l.b16 %v1513
          %v1529 = vpack.c.b16 %v1526, %v1525
          %v1530 = vpack.c.b16 %v1528, %v1527
          %v1534 = vsel %vm703, %v1509, 0
          %1536 = vmatprep.subr.bf16.mxu0 0
          %1537 = vmatpush1.bf16.msra.mxu0 0
          %1538 = vmatprep.subr.bf16.mxu0 0
          %1539 = vmatpush1.bf16.msra.mxu0 0
          %1540 = vmatprep.subr.bf16.mxu0 0
          %1541 = vmatpush1.bf16.msra.mxu0 0
          %1542 = vmatprep.subr.bf16.mxu0 0
          %1543 = vmatpush1.bf16.msra.mxu0 0
          %1544 = vmatprep.subr.bf16.mxu0 0
          %1545 = vmatpush1.bf16.msra.mxu0 0
          %1546 = vmatprep.subr.bf16.mxu0 0
          %1547 = vmatpush1.bf16.msra.mxu0 0
          %1548 = vmatprep.subr.bf16.mxu0 0
          %1549 = vmatpush1.bf16.msra.mxu0 %v1530
          %1550 = vmatprep.subr.bf16.mxu0 0
          %1551 = vmatpush1.bf16.msra.mxu0 %v1529
          %1552 = vmatprep.subr.bf16.mxu0 0
          %1553 = vmatpush2.bf16.msra.mxu0 0
          %1554 = vmatprep.subr.bf16.mxu0 0
          %1555 = vmatpush2.bf16.msra.mxu0 0
          %1556 = vmatprep.subr.bf16.mxu0 0
          %1557 = vmatpush2.bf16.msra.mxu0 0
          %1558 = vmatprep.subr.bf16.mxu0 0
          %1559 = vmatpush2.bf16.msra.mxu0 0
          %1560 = vmatprep.subr.bf16.mxu0 0
          %1561 = vmatpush2.bf16.msra.mxu0 0
          %1562 = vmatprep.subr.bf16.mxu0 0
          %1563 = vmatpush2.bf16.msra.mxu0 0
          %1564 = vmatprep.subr.bf16.mxu0 0
          %1565 = vmatpush2.bf16.msra.mxu0 0
          %1566 = vmatprep.subr.bf16.mxu0 0
          %1567 = vmatpush2.bf16.msra.mxu0 0
          %1568 = vmatprep.mubr.bf16.mxu0 0
          %1569 = vmatmul.mubr.bf16.gmra.mxu0 %v1534
          %v1570 = vpop.f32.mrf.mxu0
          %v1571 = vadd.f32 %v1519, %v1570
          %v1572 = vpop.f32.mrf.mxu0
          %v1573 = vpop.f32.mrf.mxu0
          %v1574 = vpop.f32.mrf.mxu0
          %1575 = vdwg.mxu0
          %v1576 = vmax.f32 %v1571, 0.0
          %v1577 = vpack.c.bf16 %v1576, %v1576
          %v1578 = vld [vmem:[%s11] sm:$0xf]
          %v1579 = vld [vmem:[%s11 + $0x4] sm:$0xf]
          %v1580 = vld [vmem:[%s11 + $0x8] sm:$0xf]
          %v1581 = vld [vmem:[%s11 + $0xc] sm:$0xf]
          %v1582 = vld [vmem:[%s11 + $0x10] sm:$0xf]
          %v1583 = vld [vmem:[%s11 + $0x14] sm:$0xf]
          %v1584 = vld [vmem:[%s11 + $0x18] sm:$0xf]
          %v1585 = vld [vmem:[%s11 + $0x1c] sm:$0xf]
          %v1586 = vld [vmem:[%s12] sm:$0x1]
          %v1588 = vlaneseq
          %v1589 = vshrl.u32 %v1588, 7
          %v1590 = vsub.s32 0, %v1589
          %v1591 = vrot.slane %v1586, %v1590
          %v1601 = vunpack.c.l.b16 %v1578
          %v1602 = vunpack.c.l.b16 %v1579
          %v1603 = vunpack.c.l.b16 %v1580
          %v1604 = vunpack.c.l.b16 %v1581
          %v1605 = vunpack.c.l.b16 %v1582
          %v1606 = vunpack.c.l.b16 %v1583
          %v1607 = vunpack.c.l.b16 %v1584
          %v1608 = vunpack.c.l.b16 %v1585
          %v1609 = vpack.c.b16 %v1602, %v1601
          %v1610 = vpack.c.b16 %v1604, %v1603
          %v1611 = vpack.c.b16 %v1606, %v1605
          %v1612 = vpack.c.b16 %v1608, %v1607
          %vm1617 = vcmask 523264
          %v1619 = vsel %vm1617, %v1577, 0
          %1621 = vmatprep.subr.bf16.mxu0 0
          %1622 = vmatpush1.bf16.msra.mxu0 0
          %1623 = vmatprep.subr.bf16.mxu0 0
          %1624 = vmatpush1.bf16.msra.mxu0 0
          %1625 = vmatprep.subr.bf16.mxu0 0
          %1626 = vmatpush1.bf16.msra.mxu0 0
          %1627 = vmatprep.subr.bf16.mxu0 0
          %1628 = vmatpush1.bf16.msra.mxu0 0
          %1629 = vmatprep.subr.bf16.mxu0 0
          %1630 = vmatpush1.bf16.msra.mxu0 %v1612
          %1631 = vmatprep.subr.bf16.mxu0 0
          %1632 = vmatpush1.bf16.msra.mxu0 %v1611
          %1633 = vmatprep.subr.bf16.mxu0 0
          %1634 = vmatpush1.bf16.msra.mxu0 %v1610
          %1635 = vmatprep.subr.bf16.mxu0 0
          %1636 = vmatpush1.bf16.msra.mxu0 %v1609
          %1637 = vmatprep.subr.bf16.mxu0 0
          %1638 = vmatpush2.bf16.msra.mxu0 0
          %1639 = vmatprep.subr.bf16.mxu0 0
          %1640 = vmatpush2.bf16.msra.mxu0 0
          %1641 = vmatprep.subr.bf16.mxu0 0
          %1642 = vmatpush2.bf16.msra.mxu0 0
          %1643 = vmatprep.subr.bf16.mxu0 0
          %1644 = vmatpush2.bf16.msra.mxu0 0
          %1645 = vmatprep.subr.bf16.mxu0 0
          %1646 = vmatpush2.bf16.msra.mxu0 0
          %1647 = vmatprep.subr.bf16.mxu0 0
          %1648 = vmatpush2.bf16.msra.mxu0 0
          %1649 = vmatprep.subr.bf16.mxu0 0
          %1650 = vmatpush2.bf16.msra.mxu0 0
          %1651 = vmatprep.subr.bf16.mxu0 0
          %1652 = vmatpush2.bf16.msra.mxu0 0
          %1653 = vmatprep.mubr.bf16.mxu0 0
          %1654 = vmatmul.mubr.bf16.gmra.mxu0 %v1619
          %v1655 = vpop.f32.mrf.mxu0
          %v1656 = vadd.f32 %v1591, %v1655
          %v1657 = vpop.f32.mrf.mxu0
          %v1658 = vpop.f32.mrf.mxu0
          %v1659 = vpop.f32.mrf.mxu0
          %1660 = vdwg.mxu0
          %v1661 = vadd.f32 %v1508, %v1656
          %v1662 = vld [vmem:[%s13] sm:$0x1]
          %v1663 = vld [vmem:[%s14] sm:$0x1]
          %v1664 = vsel %vm703, %v1661, 0.0
          %1665 = vadd.xlane.f32.xlu0 %v1664
          %v1666 = vpop.xlane.xlu0 %1665
          %v1667 = vmul.f32 %v1666, %v1484
          %v1668 = vsub.f32 %v1661, %v1667
          %v1669 = vmul.f32 %v1668, %v1668
          %v1670 = vsel %vm703, %v1669, 0.0
          %1671 = vadd.xlane.f32.xlu0 %v1670
          %v1672 = vpop.xlane.xlu0 %1671
          %v1673 = vmul.f32 %v1672, %v1484
          %v1674 = vadd.f32 %v1673, 1e-05
          %v1675 = vrsqrt.pop %v1674
          %v1676 = vmul.f32 %v1668, %v1675
          %v1678 = vlaneseq
          %v1679 = vshrl.u32 %v1678, 7
          %v1680 = vsub.s32 0, %v1679
          %v1681 = vrot.slane %v1662, %v1680
          %v1683 = vmul.f32 %v1676, %v1681
          %v1685 = vlaneseq
          %v1686 = vshrl.u32 %v1685, 7
          %v1687 = vsub.s32 0, %v1686
          %v1688 = vrot.slane %v1663, %v1687
          %v1690 = vadd.f32 %v1683, %v1688
          %1691 = vst.msk [vmem:[%s595] sm:$0xff] %vm703, %v1690
        $region104: #{tpu_custom_call.1} parent=75 // pred_fallthru
          _
        %s1692 = sand.u32 %s377, 1
        %s1693 = scalar_lea.sflag [#allocation10], %s1692
        %s1694 = sand.u32 %s377, 1
        %s1695 = smul.addr %s1694, 8
        %s1696 = scalar_lea.vmem [#allocation17], %s1695
        // Predicated region
        $region105: #{tpu_custom_call.1} parent=75 // pred_check
          %p1697 = pneg %p387
        $region106: #{tpu_custom_call.1} parent=75 // pred_check_branch
          %1699 = sbr.rel (%p1697) target = $region108
        $region107: #{tpu_custom_call.1} parent=75 // pred_region
          %s1701 = ssub.s32 128, 128
          %1702 = vsyncadd %s1693, %s1701
          %s1703 = smul.addr %s45, 2
          %s1704 = sadd.s32 %s46, %s1703
          %s1705 = smul.addr %s1704, 128
          %s1706 = scalar_lea.hbm %s15, %s1705
          %s1708 = sshll.u32 %s1696, 4
          %s1709 = int_to_ptr.vmem [resolvable:$true] %s1708
          %1711 = dma.vmem_to_hbm [thread:$0]  %s1709, 128, %s1706, %s1693
        $region108: #{tpu_custom_call.1} parent=75 // pred_fallthru
          _
      $region76: #{tpu_custom_call.1} parent=5 // pred_fallthru
        _
      %p1712 = scmp.le.s32.totalorder 2, %s35
      // Predicated region
      $region109: #{tpu_custom_call.1} parent=5 // pred_check
        %p1713 = pneg %p1712
      $region110: #{tpu_custom_call.1} parent=5 // pred_check_branch
        %1715 = sbr.rel (%p1713) target = $region112
      $region111: #{tpu_custom_call.1} parent=5 // pred_region
        %s1716 = ssub.s32 %s35, 2
        // Predicated region
        $region113: #{tpu_custom_call.1} parent=111 // pred_check
          %p1717 = pneg %p393
        $region114: #{tpu_custom_call.1} parent=111 // pred_check_branch
          %1719 = sbr.rel (%p1717) target = $region116
        $region115: #{tpu_custom_call.1} parent=111 // pred_region
          %s1720 = sand.u32 %s378, 1
          %s1721 = scalar_lea.sflag [#allocation10], %s1720
          %s1722 = sand.u32 %s378, 1
          %s1723 = smul.addr %s1722, 8
          %s1724 = scalar_lea.vmem [#allocation17], %s1723
          %1725 = dma.done %s1721, 128
        $region116: #{tpu_custom_call.1} parent=111 // pred_fallthru
          _
      $region112: #{tpu_custom_call.1} parent=5 // pred_fallthru
        _
    $region6: #{tpu_custom_call.1} parent=1 // loop_footer
      %s39 = sadd.s32 1, %s35
    $region7: #{tpu_custom_call.1} parent=1 // loop_footer_branch
      %34 = sbr.rel target = $region3
    $region8: #{tpu_custom_call.1} parent=1 // loop_exit
      _
    %1726 = vsyncpa [#allocation9], 1
    %s1727 = scalar_lea.sflag [#allocation9], 1
    %1728 = vsyncpa %s1727, 1
    %1729 = vsyncpa [#allocation12], 1
    %1730 = vsyncpa [#allocation15], 1
    %1731 = vsyncpa [#allocation10], 1
    %s1732 = scalar_lea.sflag [#allocation10], 1
    %1733 = vsyncpa %s1732, 1

</llo_original>
